<compile_context>
chip_gen: v7x
topology: tpu7x:2x2x1
jax: 0.10.0
libtpu: 0.0.40
codegen_flags: <defaults>
</compile_context>

<pallas_src>
import jax
import jax.numpy as jnp
from jax.experimental import pallas as pl
from jax.experimental.pallas import tpu as pltpu


def conv_bn_relu6_kernel(p_ref, w_ref, shift_ref, o_ref):
    # p_ref:     [K, tm]   bf16   (im2col patch tile, channel-major)
    # w_ref:     [Cout, K] bf16   (BN scale pre-folded, resident)
    # shift_ref: [Cout, 1] f32    (BN shift, resident)
    # o_ref:     [Cout, tm] bf16  (NCHW-flattened output tile)
    acc = jnp.dot(w_ref[...], p_ref[...], preferred_element_type=jnp.float32)
    y = acc + shift_ref[...]
    o_ref[...] = jnp.minimum(jnp.maximum(y, 0.0), 6.0).astype(o_ref.dtype)


def _pick_tm(m_per, tm_max=1024):
    # Largest multiple of 128 <= tm_max that still gives >= 2 grid steps along M
    # (keeps padding negligible and lets v7x use both TensorCores).
    tm = max(128, min(tm_max, ((m_per + 127) // 128) * 128))
    while tm > 128 and ((m_per + tm - 1) // tm) < 2:
        tm //= 2
    return tm


def conv_bn_relu6(x, weight, gamma, beta, running_mean, running_var,
                  eps=1e-5, stride=2, padding=3, tm_max=1024,
                  compute_dtype=jnp.bfloat16, out_dtype=jnp.bfloat16):
    N, Cin, H, W = x.shape
    Cout, _, KH, KW = weight.shape
    OH = (H + 2 * padding - KH) // stride + 1
    OW = (W + 2 * padding - KW) // stride + 1
    K = Cin * KH * KW
    Mper = OH * OW

    # ---- fold eval-mode BatchNorm into the conv weights (conv has no bias) ----
    scale = gamma / jnp.sqrt(running_var + eps)                      # [Cout]
    shift = beta - running_mean * scale                              # [Cout]
    # weight [Cout, Cin, KH, KW] -> [Cout, K] with K ordered (cin, kh, kw)
    w_mat = (weight * scale[:, None, None, None]).reshape(Cout, K).astype(compute_dtype)
    shift2 = shift.reshape(Cout, 1).astype(jnp.float32)

    # ---- im2col, channel-major [N, K, M] (K order = (cin, kh, kw)) ----
    xp = jnp.pad(x, ((0, 0), (0, 0), (padding, padding), (padding, padding)))
    cols = [xp[:, :, kh:kh + stride * OH:stride, kw:kw + stride * OW:stride]
            for kh in range(KH) for kw in range(KW)]                 # each [N, Cin, OH, OW]
    patches = jnp.stack(cols, axis=2)                                # [N, Cin, KH*KW, OH, OW]
    patches = patches.reshape(N, K, Mper).astype(compute_dtype)      # [N, K, M]

    tm = _pick_tm(Mper, tm_max)
    Mp = ((Mper + tm - 1) // tm) * tm
    if Mp != Mper:
        patches = jnp.pad(patches, ((0, 0), (0, 0), (0, Mp - Mper)))

    out_itemsize = jnp.dtype(out_dtype).itemsize
    cost = pl.CostEstimate(
        flops=2 * N * Mp * K * Cout,
        transcendentals=0,
        bytes_accessed=(N * K * Mp * patches.dtype.itemsize
                        + Cout * K * w_mat.dtype.itemsize
                        + Cout * 4
                        + N * Cout * Mp * out_itemsize))

    out = pl.pallas_call(
        conv_bn_relu6_kernel,
        out_shape=jax.ShapeDtypeStruct((N, Cout, Mp), out_dtype),
        grid_spec=pltpu.PrefetchScalarGridSpec(
            num_scalar_prefetch=0,
            grid=(N, Mp // tm),
            in_specs=[
                pl.BlockSpec((None, K, tm), lambda n, i: (n, 0, i)),   # patch tile
                pl.BlockSpec((Cout, K), lambda n, i: (0, 0)),          # weights: resident
                pl.BlockSpec((Cout, 1), lambda n, i: (0, 0)),          # shift: resident
            ],
            out_specs=pl.BlockSpec((None, Cout, tm), lambda n, i: (n, 0, i)),
        ),
        compiler_params=pltpu.CompilerParams(
            dimension_semantics=("parallel", "parallel"),
            allow_input_fusion=[True, False, False]),
        cost_estimate=cost,
    )(patches, w_mat, shift2)

    if Mp != Mper:
        out = out[:, :, :Mper]
    # already channel-major -> just reshape to NCHW (no transpose pass)
    return out.reshape(N, Cout, OH, OW)


if __name__ == "__main__":
    key = jax.random.PRNGKey(0)
    kx, kw = jax.random.split(key)

    # small shapes consistent with the module: NCHW, Cin=3, Cout=512, 7x7 conv s=2 p=3
    N, Cin, H, W = 1, 3, 32, 32
    Cout, KH, KW = 512, 7, 7

    x = jax.random.normal(kx, (N, Cin, H, W), dtype=jnp.float32)
    weight = jax.random.normal(kw, (Cout, Cin, KH, KW), dtype=jnp.float32) * 0.05

    # deterministic BatchNorm parameters / running stats (eval mode)
    c = jnp.arange(Cout, dtype=jnp.float32)
    gamma = 1.0 + 0.01 * jnp.sin(c)
    beta = 0.1 * jnp.cos(c)
    running_mean = 0.05 * jnp.sin(0.5 * c)
    running_var = 1.0 + 0.1 * (jnp.cos(0.3 * c) ** 2)

    y = conv_bn_relu6(x, weight, gamma, beta, running_mean, running_var)
    y = jax.block_until_ready(y)

    # reference (plain JAX, full f32) for a sanity check
    ref = jax.lax.conv_general_dilated(
        x, weight, window_strides=(2, 2), padding=((3, 3), (3, 3)),
        dimension_numbers=("NCHW", "OIHW", "NCHW"))
    scale = gamma / jnp.sqrt(running_var + 1e-5)
    shift = beta - running_mean * scale
    ref = ref * scale[None, :, None, None] + shift[None, :, None, None]
    ref = jnp.clip(ref, 0.0, 6.0)

    assert y.shape == (N, Cout, H // 2, W // 2), y.shape
    # bf16 input/weight/output streaming with f32 MXU accumulation -> relaxed tol
    yf = y.astype(jnp.float32)
    assert jnp.allclose(yf, ref, atol=5e-2, rtol=5e-2), float(jnp.max(jnp.abs(yf - ref)))
    print("KERNEL_OK")
</pallas_src>

<mosaic_0001>
module attributes {stable_mosaic.version = 11 : i64} {
  func.func @conv_bn_relu6_kernel(%arg0: i32, %arg1: i32, %arg2: memref<1x147x128xbf16, #tpu.memory_space<vmem>>, %arg3: memref<512x147xbf16, #tpu.memory_space<vmem>>, %arg4: memref<512x1xf32, #tpu.memory_space<vmem>>, %arg5: memref<1x512x128xbf16, #tpu.memory_space<vmem>>) attributes {dimension_semantics = [#tpu.dimension_semantics<parallel>, #tpu.dimension_semantics<parallel>], iteration_bounds = array<i64: 1, 2>, scalar_prefetch = 0 : i64, scratch_operands = 0 : i64, tpu.core_type = #tpu.core_type<tc>, window_params = [{transform_indices = @transform_0, window_bounds = array<i64: 1, 147, 128>}, {pipeline_mode = #tpu.pipeline_mode<synchronous>, transform_indices = @transform_1, window_bounds = array<i64: 512, 147>}, {pipeline_mode = #tpu.pipeline_mode<synchronous>, transform_indices = @transform_2, window_bounds = array<i64: 512, 1>}, {transform_indices = @transform_3, window_bounds = array<i64: 1, 512, 128>}]} {
    %c0 = arith.constant 0 : index
    %c0_0 = arith.constant 0 : index
    %0 = vector.load %arg3[%c0, %c0_0] : memref<512x147xbf16, #tpu.memory_space<vmem>>, vector<512x147xbf16>
    %c0_1 = arith.constant 0 : index
    %c0_2 = arith.constant 0 : index
    %c0_3 = arith.constant 0 : index
    %1 = vector.load %arg2[%c0_1, %c0_2, %c0_3] : memref<1x147x128xbf16, #tpu.memory_space<vmem>>, vector<1x147x128xbf16>
    %2 = vector.shape_cast %1 : vector<1x147x128xbf16> to vector<147x128xbf16>
    %cst = arith.constant dense<0.000000e+00> : vector<512x128xf32>
    %3 = tpu.matmul %0, %2, %cst {dimension_numbers = #tpu.dot_dimension_numbers<[1], [0], [0], [1], [0, 0, 1, 1], [], []>} : vector<512x147xbf16>, vector<147x128xbf16>, vector<512x128xf32> -> vector<512x128xf32>
    %c0_4 = arith.constant 0 : index
    %c0_5 = arith.constant 0 : index
    %4 = vector.load %arg4[%c0_4, %c0_5] : memref<512x1xf32, #tpu.memory_space<vmem>>, vector<512x1xf32>
    %5 = vector.broadcast %4 : vector<512x1xf32> to vector<512x128xf32>
    %6 = arith.addf %3, %5 : vector<512x128xf32>
    %cst_6 = arith.constant 0.000000e+00 : f32
    %7 = vector.broadcast %cst_6 : f32 to vector<512x128xf32>
    %8 = arith.maximumf %6, %7 : vector<512x128xf32>
    %cst_7 = arith.constant 6.000000e+00 : f32
    %9 = vector.broadcast %cst_7 : f32 to vector<512x128xf32>
    %10 = arith.minimumf %8, %9 : vector<512x128xf32>
    %11 = arith.truncf %10 : vector<512x128xf32> to vector<512x128xbf16>
    %c0_8 = arith.constant 0 : index
    %c0_9 = arith.constant 0 : index
    %c0_10 = arith.constant 0 : index
    %12 = vector.load %arg5[%c0_8, %c0_9, %c0_10] : memref<1x512x128xbf16, #tpu.memory_space<vmem>>, vector<1x512x128xbf16>
    %13 = vector.shape_cast %12 : vector<1x512x128xbf16> to vector<512x128xbf16>
    %14 = vector.shape_cast %11 : vector<512x128xbf16> to vector<1x512x128xbf16>
    tpu.vector_store %arg5[%c0_8, %c0_9, %c0_10], %14 {strides = array<i32>} : memref<1x512x128xbf16, #tpu.memory_space<vmem>>, vector<1x512x128xbf16>,
    return
  }
  func.func @transform_0(%arg0: i32, %arg1: i32) -> (i32, i32, i32) {
    %c0_i32 = arith.constant 0 : i32
    %c0_i32_0 = arith.constant 0 : i32
    return %arg0, %c0_i32, %arg1 : i32, i32, i32
  }
  func.func @transform_1(%arg0: i32, %arg1: i32) -> (i32, i32) {
    %c0_i32 = arith.constant 0 : i32
    %c0_i32_0 = arith.constant 0 : i32
    %c0_i32_1 = arith.constant 0 : i32
    return %c0_i32, %c0_i32_0 : i32, i32
  }
  func.func @transform_2(%arg0: i32, %arg1: i32) -> (i32, i32) {
    %c0_i32 = arith.constant 0 : i32
    %c0_i32_0 = arith.constant 0 : i32
    %c0_i32_1 = arith.constant 0 : i32
    return %c0_i32, %c0_i32_0 : i32, i32
  }
  func.func @transform_3(%arg0: i32, %arg1: i32) -> (i32, i32, i32) {
    %c0_i32 = arith.constant 0 : i32
    %c0_i32_0 = arith.constant 0 : i32
    return %arg0, %c0_i32, %arg1 : i32, i32, i32
  }
}

</mosaic_0001>

<llo_original>
// kernel: tpu_custom_call.1
$region0: #{tpu_custom_call.1}
  #allocation0 [shape = 'u32[]', space=smem, size = 0x4, offset = 0x4, fixed_abs, tag = 'smem constant byte address 0x4 - core index']
  #allocation1 [shape = 'u32[144,128]{1,0:T(1,128)}', space=vmem, size = 0x12000, scoped, tag = 'internal scratch']
  %s0 = inlined_call_operand.vmem [shape: bf16[1,147,256], index: 0, kind: input, shape index: {}]
  %s1 = inlined_call_operand.vmem [shape: bf16[512,147], index: 1, kind: input, shape index: {}]
  %s2 = inlined_call_operand.vmem [shape: f32[512,1], index: 2, kind: input, shape index: {}]
  %s3 = inlined_call_operand.hbm [shape: bf16[1,512,256], index: 3, kind: output, shape index: {}]
  %s4 = sld [smem:[#allocation0]]
  $region86: #{tpu_custom_call.1} parent=0
    _
  %s6 = ssub.s32 1, %s4
  %s7 = scalar_select 0, %s6, %s4
  $region1: #{tpu_custom_call.1} parent=0
    #allocation2 [shape = 'u8[77824]{0}', space=vmem, size = 0x13000, scoped, tag = 'input window, operand 0']
    #allocation3 [shape = 'u8[262144]{0}', space=vmem, size = 0x40000, scoped, tag = 'output window, operand 0']
    #allocation4 [shape = 's32[2]{0}', space=sflag, size = 0x8, scoped, tag = 'scoped memory for tpu_custom_call.1']
    %8 = vsyncpa [#allocation4], 0
    %s9 = scalar_lea.sflag [#allocation4], 1
    %10 = vsyncpa %s9, 0
    loop: start=0, step=1, limit=4
    $region2: #{tpu_custom_call.1} parent=1 // loop_pre_header
      _
    $region3: #{tpu_custom_call.1} parent=1 // loop_header
      %s12 = sphi 0, %s16
      %p13 = scmp.ge.s32.totalorder %s12, 4
      %s19 = sphi 0, %s31
      %s20 = sphi 0, %s27
      %s21 = sphi 0, %s19
      %s22 = sphi 0, %s20
      %s23 = sphi 0, %s21
      %s24 = sphi 0, %s22
      %s36 = sphi 0, %s38
      %s39 = sphi 0, %s36
      %s40 = sphi 0, %s39
      %s56 = sphi 0, %s40
      %s60 = sphi 0, %s60
      %s62 = sphi 0, %s60
      %s63 = sphi 0, %s62
      %s77 = sphi 0, %s63
      %s81 = sphi 0, %s81
      %s83 = sphi 0, %s81
      %s84 = sphi 0, %s83
      %s98 = sphi 0, %s84
      %s106 = sphi 0, %s108
      %s109 = sphi 0, %s106
      %s110 = sphi 0, %s109
      %s126 = sphi 0, %s110
    $region4: #{tpu_custom_call.1} parent=1 // loop_header_branch
      %15 = sbr.rel (%p13) target = $region8
    $region5: #{tpu_custom_call.1} parent=1 // loop_body
      %s17 = ssub.s32 %s12, 1
      %s18 = ssub.s32 %s12, 2
      %s25 = sadd.s32 1, %s20
      %p26 = scmp.ge.s32.totalorder %s25, 2
      %s27 = scalar_select %p26, 0, %s25
      %s28 = sadd.s32 1, %s19
      %s29 = scalar_select %p26, %s28, %s19
      %p30 = scmp.ge.s32.totalorder %s29, 1
      %s31 = scalar_select %p30, 0, %s29
      %s32 = ssub.s32 %s19, %s31
      %s33 = ssub.s32 %s20, %s27
      %s34 = sor.u32 %s32, %s33
      %p35 = scmp.eq.s32.totalorder %s34, 0
      %s37 = sadd.s32 %s36, 1
      %s38 = scalar_select %p35, %s36, %s37
      %p41 = pneg %p35
      %p42 = scmp.eq.s32.totalorder %s12, 1
      %p43 = por %p41, %p42
      %p44 = scmp.ne.s32.totalorder %s36, %s39
      %p45 = scmp.eq.s32.totalorder %s12, 0
      %p46 = por %p44, %p45
      %p47 = scmp.ne.s32.totalorder %s36, %s39
      %p48 = scmp.eq.s32.totalorder %s17, 1
      %p49 = por %p47, %p48
      %p50 = scmp.ne.s32.totalorder %s39, %s40
      %p51 = scmp.eq.s32.totalorder %s17, 0
      %p52 = por %p50, %p51
      %p53 = scmp.ne.s32.totalorder %s39, %s40
      %p54 = scmp.eq.s32.totalorder %s18, 1
      %p55 = por %p53, %p54
      %p57 = scmp.ne.s32.totalorder %s40, %s56
      %p58 = scmp.eq.s32.totalorder %s18, 0
      %p59 = por %p57, %p58
      %s61 = sadd.s32 %s60, 1
      %p64 = scmp.eq.s32.totalorder %s12, 1
      %p65 = scmp.ne.s32.totalorder %s60, %s62
      %p66 = scmp.eq.s32.totalorder %s12, 0
      %p67 = por %p65, %p66
      %p68 = scmp.ne.s32.totalorder %s60, %s62
      %p69 = scmp.eq.s32.totalorder %s17, 1
      %p70 = por %p68, %p69
      %p71 = scmp.ne.s32.totalorder %s62, %s63
      %p72 = scmp.eq.s32.totalorder %s17, 0
      %p73 = por %p71, %p72
      %p74 = scmp.ne.s32.totalorder %s62, %s63
      %p75 = scmp.eq.s32.totalorder %s18, 1
      %p76 = por %p74, %p75
      %p78 = scmp.ne.s32.totalorder %s63, %s77
      %p79 = scmp.eq.s32.totalorder %s18, 0
      %p80 = por %p78, %p79
      %s82 = sadd.s32 %s81, 1
      %p85 = scmp.eq.s32.totalorder %s12, 1
      %p86 = scmp.ne.s32.totalorder %s81, %s83
      %p87 = scmp.eq.s32.totalorder %s12, 0
      %p88 = por %p86, %p87
      %p89 = scmp.ne.s32.totalorder %s81, %s83
      %p90 = scmp.eq.s32.totalorder %s17, 1
      %p91 = por %p89, %p90
      %p92 = scmp.ne.s32.totalorder %s83, %s84
      %p93 = scmp.eq.s32.totalorder %s17, 0
      %p94 = por %p92, %p93
      %p95 = scmp.ne.s32.totalorder %s83, %s84
      %p96 = scmp.eq.s32.totalorder %s18, 1
      %p97 = por %p95, %p96
      %p99 = scmp.ne.s32.totalorder %s84, %s98
      %p100 = scmp.eq.s32.totalorder %s18, 0
      %p101 = por %p99, %p100
      %s102 = ssub.s32 %s19, %s31
      %s103 = ssub.s32 %s20, %s27
      %s104 = sor.u32 %s102, %s103
      %p105 = scmp.eq.s32.totalorder %s104, 0
      %s107 = sadd.s32 %s106, 1
      %s108 = scalar_select %p105, %s106, %s107
      %p111 = pneg %p105
      %p112 = scmp.eq.s32.totalorder %s12, 1
      %p113 = por %p111, %p112
      %p114 = scmp.ne.s32.totalorder %s106, %s109
      %p115 = scmp.eq.s32.totalorder %s12, 0
      %p116 = por %p114, %p115
      %p117 = scmp.ne.s32.totalorder %s106, %s109
      %p118 = scmp.eq.s32.totalorder %s17, 1
      %p119 = por %p117, %p118
      %p120 = scmp.ne.s32.totalorder %s109, %s110
      %p121 = scmp.eq.s32.totalorder %s17, 0
      %p122 = por %p120, %p121
      %p123 = scmp.ne.s32.totalorder %s109, %s110
      %p124 = scmp.eq.s32.totalorder %s18, 1
      %p125 = por %p123, %p124
      %p127 = scmp.ne.s32.totalorder %s110, %s126
      %p128 = scmp.eq.s32.totalorder %s18, 0
      %p129 = por %p127, %p128
      %p130 = scmp.le.s32.totalorder 1, %s12
      %p131 = scmp.lt.s32.totalorder %s12, 3
      %p132 = pnand %p130, %p131
      %p133 = pneg %p132
      // Predicated region
      $region9: #{tpu_custom_call.1} parent=5 // pred_check
        _
      $region10: #{tpu_custom_call.1} parent=5 // pred_check_branch
        %135 = sbr.rel (%p132) target = $region12
      $region11: #{tpu_custom_call.1} parent=5 // pred_region
        %s136 = ssub.s32 %s12, 1
        // Predicated region
        $region13: #{tpu_custom_call.1} parent=11 // pred_check
          %p137 = pneg %p73
        $region14: #{tpu_custom_call.1} parent=11 // pred_check_branch
          %139 = sbr.rel (%p137) target = $region16
        $region15: #{tpu_custom_call.1} parent=11 // pred_region
          _
        $region16: #{tpu_custom_call.1} parent=11 // pred_fallthru
          _
        // Predicated region
        $region17: #{tpu_custom_call.1} parent=11 // pred_check
          %p140 = pneg %p94
        $region18: #{tpu_custom_call.1} parent=11 // pred_check_branch
          %142 = sbr.rel (%p140) target = $region20
        $region19: #{tpu_custom_call.1} parent=11 // pred_region
          _
        $region20: #{tpu_custom_call.1} parent=11 // pred_fallthru
          _
      $region12: #{tpu_custom_call.1} parent=5 // pred_fallthru
        _
      %p143 = scmp.lt.s32.totalorder %s12, 2
      // Predicated region
      $region21: #{tpu_custom_call.1} parent=5 // pred_check
        %p144 = pneg %p143
      $region22: #{tpu_custom_call.1} parent=5 // pred_check_branch
        %146 = sbr.rel (%p144) target = $region24
      $region23: #{tpu_custom_call.1} parent=5 // pred_region
        // Predicated region
        $region25: #{tpu_custom_call.1} parent=23 // pred_check
          %p147 = pneg %p46
        $region26: #{tpu_custom_call.1} parent=23 // pred_check_branch
          %149 = sbr.rel (%p147) target = $region28
        $region27: #{tpu_custom_call.1} parent=23 // pred_region
          %s150 = sand.u32 %s36, 1
          %s151 = sand.u32 %s36, 1
          %s152 = smul.addr %s151, 76
          %s153 = scalar_lea.vmem [#allocation2], %s152
          %s154 = smul.addr %s19, 38
          %s155 = sadd.s32 %s20, %s154
          %s156 = smul.addr %s155, 4
          %s157 = scalar_lea.vmem %s0, %s156
          // Predicated region
          $region29: #{tpu_custom_call.1} parent=27 // pred_check
            _
          $region30: #{tpu_custom_call.1} parent=27 // pred_check_branch
            %159 = sbr.rel (0) target = $region32
          $region31: #{tpu_custom_call.1} parent=27 // pred_region
            // Predicated region
            $region33: #{tpu_custom_call.1} parent=31 // pred_check
              _
            $region34: #{tpu_custom_call.1} parent=31 // pred_check_branch
              %161 = sbr.rel target = $region36
            $region35: #{tpu_custom_call.1} parent=31 // pred_region
              // Predicated region
              $region48: #{tpu_custom_call.1} parent=35 // pred_check
                _
              $region49: #{tpu_custom_call.1} parent=35 // pred_check_branch
                %212 = sbr.rel (0) target = $region51
              $region50: #{tpu_custom_call.1} parent=35 // pred_region
                loop: start=0, step=1, limit=1
                $region52: #{tpu_custom_call.1} parent=50 // loop_pre_header
                  _
                $region53: #{tpu_custom_call.1} parent=50 // loop_header
                  %s214 = sphi 0, %s218
                  %p215 = scmp.ge.s32.totalorder %s214, 1
                  %s219 = sphi %s157, %s157
                  %s220 = sphi %s153, %s153
                $region54: #{tpu_custom_call.1} parent=50 // loop_header_branch
                  %217 = sbr.rel (%p215) target = $region58
                $region55: #{tpu_custom_call.1} parent=50 // loop_body
                  _
                $region56: #{tpu_custom_call.1} parent=50 // loop_footer
                  %s218 = sadd.s32 1, %s214
                $region57: #{tpu_custom_call.1} parent=50 // loop_footer_branch
                  %213 = sbr.rel target = $region53
                $region58: #{tpu_custom_call.1} parent=50 // loop_exit
                  _
                loop: start=0, step=1, limit=1
                $region59: #{tpu_custom_call.1} parent=50 // loop_pre_header
                  _
                $region60: #{tpu_custom_call.1} parent=50 // loop_header
                  %s223 = sphi 0, %s227
                  %p224 = scmp.ge.s32.totalorder %s223, 1
                  %s228 = sphi %s157, %s157
                  %s229 = sphi %s153, %s153
                $region61: #{tpu_custom_call.1} parent=50 // loop_header_branch
                  %226 = sbr.rel (%p224) target = $region65
                $region62: #{tpu_custom_call.1} parent=50 // loop_body
                  %v230 = vld [vmem:[%s228] sm:$0xf]
                  %231 = vst [vmem:[%s229] sm:$0xf] %v230
                  %v232 = vld [vmem:[%s228 + $0x8] sm:$0xf]
                  %233 = vst [vmem:[%s229 + $0x4] sm:$0xf] %v232
                  %v234 = vld [vmem:[%s228 + $0x10] sm:$0xf]
                  %235 = vst [vmem:[%s229 + $0x8] sm:$0xf] %v234
                  %v236 = vld [vmem:[%s228 + $0x18] sm:$0xf]
                  %237 = vst [vmem:[%s229 + $0xc] sm:$0xf] %v236
                  %v238 = vld [vmem:[%s228 + $0x20] sm:$0xf]
                  %239 = vst [vmem:[%s229 + $0x10] sm:$0xf] %v238
                  %v240 = vld [vmem:[%s228 + $0x28] sm:$0xf]
                  %241 = vst [vmem:[%s229 + $0x14] sm:$0xf] %v240
                  %v242 = vld [vmem:[%s228 + $0x30] sm:$0xf]
                  %243 = vst [vmem:[%s229 + $0x18] sm:$0xf] %v242
                  %v244 = vld [vmem:[%s228 + $0x38] sm:$0xf]
                  %245 = vst [vmem:[%s229 + $0x1c] sm:$0xf] %v244
                  %v246 = vld [vmem:[%s228 + $0x40] sm:$0xf]
                  %247 = vst [vmem:[%s229 + $0x20] sm:$0xf] %v246
                  %v248 = vld [vmem:[%s228 + $0x48] sm:$0xf]
                  %249 = vst [vmem:[%s229 + $0x24] sm:$0xf] %v248
                  %v250 = vld [vmem:[%s228 + $0x50] sm:$0xf]
                  %251 = vst [vmem:[%s229 + $0x28] sm:$0xf] %v250
                  %v252 = vld [vmem:[%s228 + $0x58] sm:$0xf]
                  %253 = vst [vmem:[%s229 + $0x2c] sm:$0xf] %v252
                  %v254 = vld [vmem:[%s228 + $0x60] sm:$0xf]
                  %255 = vst [vmem:[%s229 + $0x30] sm:$0xf] %v254
                  %v256 = vld [vmem:[%s228 + $0x68] sm:$0xf]
                  %257 = vst [vmem:[%s229 + $0x34] sm:$0xf] %v256
                  %v258 = vld [vmem:[%s228 + $0x70] sm:$0xf]
                  %259 = vst [vmem:[%s229 + $0x38] sm:$0xf] %v258
                  %v260 = vld [vmem:[%s228 + $0x78] sm:$0xf]
                  %261 = vst [vmem:[%s229 + $0x3c] sm:$0xf] %v260
                  %v262 = vld [vmem:[%s228 + $0x80] sm:$0xf]
                  %263 = vst [vmem:[%s229 + $0x40] sm:$0xf] %v262
                  %v264 = vld [vmem:[%s228 + $0x88] sm:$0xf]
                  %265 = vst [vmem:[%s229 + $0x44] sm:$0xf] %v264
                  %v266 = vld [vmem:[%s228 + $0x90] sm:$0xf]
                  %267 = vst [vmem:[%s229 + $0x48] sm:$0xf] %v266
                $region63: #{tpu_custom_call.1} parent=50 // loop_footer
                  %s227 = sadd.s32 1, %s223
                $region64: #{tpu_custom_call.1} parent=50 // loop_footer_branch
                  %222 = sbr.rel target = $region60
                $region65: #{tpu_custom_call.1} parent=50 // loop_exit
                  _
              $region51: #{tpu_custom_call.1} parent=35 // pred_fallthru
                _
            $region36: #{tpu_custom_call.1} parent=31 // pred_fallthru
              _
            // Predicated region
            $region37: #{tpu_custom_call.1} parent=31 // pred_check
              _
            $region38: #{tpu_custom_call.1} parent=31 // pred_check_branch
              %163 = sbr.rel (0) target = $region40
            $region39: #{tpu_custom_call.1} parent=31 // pred_region
              loop: start=0, step=1, limit=1
              $region41: #{tpu_custom_call.1} parent=39 // loop_pre_header
                _
              $region42: #{tpu_custom_call.1} parent=39 // loop_header
                %s166 = sphi 0, %s170
                %p167 = scmp.ge.s32.totalorder %s166, 1
                %s171 = sphi %s157, %s157
                %s172 = sphi %s153, %s153
              $region43: #{tpu_custom_call.1} parent=39 // loop_header_branch
                %169 = sbr.rel (%p167) target = $region47
              $region44: #{tpu_custom_call.1} parent=39 // loop_body
                %v173 = vld [vmem:[%s171] sm:$0xf]
                %174 = vst [vmem:[%s172] sm:$0xf] %v173
                %v175 = vld [vmem:[%s171 + $0x8] sm:$0xf]
                %176 = vst [vmem:[%s172 + $0x4] sm:$0xf] %v175
                %v177 = vld [vmem:[%s171 + $0x10] sm:$0xf]
                %178 = vst [vmem:[%s172 + $0x8] sm:$0xf] %v177
                %v179 = vld [vmem:[%s171 + $0x18] sm:$0xf]
                %180 = vst [vmem:[%s172 + $0xc] sm:$0xf] %v179
                %v181 = vld [vmem:[%s171 + $0x20] sm:$0xf]
                %182 = vst [vmem:[%s172 + $0x10] sm:$0xf] %v181
                %v183 = vld [vmem:[%s171 + $0x28] sm:$0xf]
                %184 = vst [vmem:[%s172 + $0x14] sm:$0xf] %v183
                %v185 = vld [vmem:[%s171 + $0x30] sm:$0xf]
                %186 = vst [vmem:[%s172 + $0x18] sm:$0xf] %v185
                %v187 = vld [vmem:[%s171 + $0x38] sm:$0xf]
                %188 = vst [vmem:[%s172 + $0x1c] sm:$0xf] %v187
                %v189 = vld [vmem:[%s171 + $0x40] sm:$0xf]
                %190 = vst [vmem:[%s172 + $0x20] sm:$0xf] %v189
                %v191 = vld [vmem:[%s171 + $0x48] sm:$0xf]
                %192 = vst [vmem:[%s172 + $0x24] sm:$0xf] %v191
                %v193 = vld [vmem:[%s171 + $0x50] sm:$0xf]
                %194 = vst [vmem:[%s172 + $0x28] sm:$0xf] %v193
                %v195 = vld [vmem:[%s171 + $0x58] sm:$0xf]
                %196 = vst [vmem:[%s172 + $0x2c] sm:$0xf] %v195
                %v197 = vld [vmem:[%s171 + $0x60] sm:$0xf]
                %198 = vst [vmem:[%s172 + $0x30] sm:$0xf] %v197
                %v199 = vld [vmem:[%s171 + $0x68] sm:$0xf]
                %200 = vst [vmem:[%s172 + $0x34] sm:$0xf] %v199
                %v201 = vld [vmem:[%s171 + $0x70] sm:$0xf]
                %202 = vst [vmem:[%s172 + $0x38] sm:$0xf] %v201
                %v203 = vld [vmem:[%s171 + $0x78] sm:$0xf]
                %204 = vst [vmem:[%s172 + $0x3c] sm:$0xf] %v203
                %v205 = vld [vmem:[%s171 + $0x80] sm:$0xf]
                %206 = vst [vmem:[%s172 + $0x40] sm:$0xf] %v205
                %v207 = vld [vmem:[%s171 + $0x88] sm:$0xf]
                %208 = vst [vmem:[%s172 + $0x44] sm:$0xf] %v207
                %v209 = vld [vmem:[%s171 + $0x90] sm:$0xf]
                %210 = vst [vmem:[%s172 + $0x48] sm:$0xf] %v209
              $region45: #{tpu_custom_call.1} parent=39 // loop_footer
                %s170 = sadd.s32 1, %s166
              $region46: #{tpu_custom_call.1} parent=39 // loop_footer_branch
                %165 = sbr.rel target = $region42
              $region47: #{tpu_custom_call.1} parent=39 // loop_exit
                _
            $region40: #{tpu_custom_call.1} parent=31 // pred_fallthru
              _
          $region32: #{tpu_custom_call.1} parent=27 // pred_fallthru
            _
          %268 = vnop
        $region28: #{tpu_custom_call.1} parent=23 // pred_fallthru
          _
      $region24: #{tpu_custom_call.1} parent=5 // pred_fallthru
        _
      %p269 = scmp.le.s32.totalorder 1, %s12
      %p270 = scmp.lt.s32.totalorder %s12, 3
      %p271 = pnand %p269, %p270
      %p272 = pneg %p271
      // Predicated region
      $region66: #{tpu_custom_call.1} parent=5 // pred_check
        _
      $region67: #{tpu_custom_call.1} parent=5 // pred_check_branch
        %274 = sbr.rel (%p271) target = $region69
      $region68: #{tpu_custom_call.1} parent=5 // pred_region
        %s275 = ssub.s32 %s12, 1
        %s276 = sand.u32 %s39, 1
        %s277 = sand.u32 %s39, 1
        %s278 = smul.addr %s277, 76
        %s279 = scalar_lea.vmem [#allocation2], %s278
        // Predicated region
        $region70: #{tpu_custom_call.1} parent=68 // pred_check
          %p280 = pneg %p52
        $region71: #{tpu_custom_call.1} parent=68 // pred_check_branch
          %282 = sbr.rel (%p280) target = $region73
        $region72: #{tpu_custom_call.1} parent=68 // pred_region
          _
        $region73: #{tpu_custom_call.1} parent=68 // pred_fallthru
          _
        %s283 = sand.u32 %s39, 1
        %s284 = sand.u32 %s39, 1
        %s285 = smul.addr %s284, 76
        %s286 = scalar_lea.vmem [#allocation2], %s285
        %p287 = pneg %p52
        %p288 = pneg %p49
        %p289 = pneg %p73
        %p290 = pneg %p70
        %p291 = pneg %p94
        %p292 = pneg %p91
        %p293 = pneg %p122
        %p294 = pneg %p119
        %s295 = sand.u32 %s109, 1
        %s296 = scalar_lea.sflag [#allocation4], %s295
        %s297 = sand.u32 %s109, 1
        %s298 = smul.addr %s297, 256
        %s299 = scalar_lea.vmem [#allocation3], %s298
        %v301 = vld [vmem:[%s1] sm:$0xff]
        %v302 = vld [vmem:[%s1 + $0x8] sm:$0xff]
        %v303 = vld [vmem:[%s1 + $0x10] sm:$0xff]
        %v304 = vld [vmem:[%s1 + $0x18] sm:$0xff]
        %v305 = vld [vmem:[%s1 + $0x20] sm:$0xff]
        %v306 = vld [vmem:[%s1 + $0x28] sm:$0xff]
        %v307 = vld [vmem:[%s1 + $0x30] sm:$0xff]
        %v308 = vld [vmem:[%s1 + $0x38] sm:$0xff]
        %v309 = vld [vmem:[%s1 + $0x40] sm:$0xff]
        %v310 = vld [vmem:[%s1 + $0x48] sm:$0xff]
        %v311 = vld [vmem:[%s1 + $0x50] sm:$0xff]
        %v312 = vld [vmem:[%s1 + $0x58] sm:$0xff]
        %v313 = vld [vmem:[%s1 + $0x60] sm:$0xff]
        %v314 = vld [vmem:[%s1 + $0x68] sm:$0xff]
        %v315 = vld [vmem:[%s1 + $0x70] sm:$0xff]
        %v316 = vld [vmem:[%s1 + $0x78] sm:$0xff]
        %v317 = vld [vmem:[%s1 + $0x80] sm:$0xff]
        %v318 = vld [vmem:[%s1 + $0x88] sm:$0xff]
        %v319 = vld [vmem:[%s1 + $0x90] sm:$0xff]
        %v320 = vld [vmem:[%s1 + $0x98] sm:$0xff]
        %v321 = vld [vmem:[%s1 + $0xa0] sm:$0xff]
        %v322 = vld [vmem:[%s1 + $0xa8] sm:$0xff]
        %v323 = vld [vmem:[%s1 + $0xb0] sm:$0xff]
        %v324 = vld [vmem:[%s1 + $0xb8] sm:$0xff]
        %v325 = vld [vmem:[%s1 + $0xc0] sm:$0xff]
        %v326 = vld [vmem:[%s1 + $0xc8] sm:$0xff]
        %v327 = vld [vmem:[%s1 + $0xd0] sm:$0xff]
        %v328 = vld [vmem:[%s1 + $0xd8] sm:$0xff]
        %v329 = vld [vmem:[%s1 + $0xe0] sm:$0xff]
        %v330 = vld [vmem:[%s1 + $0xe8] sm:$0xff]
        %v331 = vld [vmem:[%s1 + $0xf0] sm:$0xff]
        %v332 = vld [vmem:[%s1 + $0xf8] sm:$0xff]
        %v333 = vld [vmem:[%s1 + $0x100] sm:$0xff]
        %v334 = vld [vmem:[%s1 + $0x108] sm:$0xff]
        %v335 = vld [vmem:[%s1 + $0x110] sm:$0xff]
        %v336 = vld [vmem:[%s1 + $0x118] sm:$0xff]
        %v337 = vld [vmem:[%s1 + $0x120] sm:$0xff]
        %v338 = vld [vmem:[%s1 + $0x128] sm:$0xff]
        %v339 = vld [vmem:[%s1 + $0x130] sm:$0xff]
        %v340 = vld [vmem:[%s1 + $0x138] sm:$0xff]
        %v341 = vld [vmem:[%s1 + $0x140] sm:$0xff]
        %v342 = vld [vmem:[%s1 + $0x148] sm:$0xff]
        %v343 = vld [vmem:[%s1 + $0x150] sm:$0xff]
        %v344 = vld [vmem:[%s1 + $0x158] sm:$0xff]
        %v345 = vld [vmem:[%s1 + $0x160] sm:$0xff]
        %v346 = vld [vmem:[%s1 + $0x168] sm:$0xff]
        %v347 = vld [vmem:[%s1 + $0x170] sm:$0xff]
        %v348 = vld [vmem:[%s1 + $0x178] sm:$0xff]
        %v349 = vld [vmem:[%s1 + $0x180] sm:$0xff]
        %v350 = vld [vmem:[%s1 + $0x188] sm:$0xff]
        %v351 = vld [vmem:[%s1 + $0x190] sm:$0xff]
        %v352 = vld [vmem:[%s1 + $0x198] sm:$0xff]
        %v353 = vld [vmem:[%s1 + $0x1a0] sm:$0xff]
        %v354 = vld [vmem:[%s1 + $0x1a8] sm:$0xff]
        %v355 = vld [vmem:[%s1 + $0x1b0] sm:$0xff]
        %v356 = vld [vmem:[%s1 + $0x1b8] sm:$0xff]
        %v357 = vld [vmem:[%s1 + $0x1c0] sm:$0xff]
        %v358 = vld [vmem:[%s1 + $0x1c8] sm:$0xff]
        %v359 = vld [vmem:[%s1 + $0x1d0] sm:$0xff]
        %v360 = vld [vmem:[%s1 + $0x1d8] sm:$0xff]
        %v361 = vld [vmem:[%s1 + $0x1e0] sm:$0xff]
        %v362 = vld [vmem:[%s1 + $0x1e8] sm:$0xff]
        %v363 = vld [vmem:[%s1 + $0x1f0] sm:$0xff]
        %v364 = vld [vmem:[%s1 + $0x1f8] sm:$0xff]
        %v365 = vld [vmem:[%s279] sm:$0xf]
        %v366 = vld [vmem:[%s279 + $0x4] sm:$0xf]
        %v367 = vld [vmem:[%s279 + $0x8] sm:$0xf]
        %v368 = vld [vmem:[%s279 + $0xc] sm:$0xf]
        %v369 = vld [vmem:[%s279 + $0x10] sm:$0xf]
        %v370 = vld [vmem:[%s279 + $0x14] sm:$0xf]
        %v371 = vld [vmem:[%s279 + $0x18] sm:$0xf]
        %v372 = vld [vmem:[%s279 + $0x1c] sm:$0xf]
        %v373 = vld [vmem:[%s279 + $0x20] sm:$0xf]
        %v374 = vld [vmem:[%s279 + $0x24] sm:$0xf]
        %v375 = vld [vmem:[%s279 + $0x28] sm:$0xf]
        %v376 = vld [vmem:[%s279 + $0x2c] sm:$0xf]
        %v377 = vld [vmem:[%s279 + $0x30] sm:$0xf]
        %v378 = vld [vmem:[%s279 + $0x34] sm:$0xf]
        %v379 = vld [vmem:[%s279 + $0x38] sm:$0xf]
        %v380 = vld [vmem:[%s279 + $0x3c] sm:$0xf]
        %v381 = vld [vmem:[%s279 + $0x40] sm:$0xf]
        %v382 = vld [vmem:[%s279 + $0x44] sm:$0xf]
        %v383 = vld [vmem:[%s279 + $0x48] sm:$0x3]
        %v384 = vld [vmem:[%s2] sm:$0xff]
        %v385 = vld [vmem:[%s2 + $0x8] sm:$0xff]
        %v386 = vld [vmem:[%s2 + $0x10] sm:$0xff]
        %v387 = vld [vmem:[%s2 + $0x18] sm:$0xff]
        %v388 = vld [vmem:[%s2 + $0x20] sm:$0xff]
        %v389 = vld [vmem:[%s2 + $0x28] sm:$0xff]
        %v390 = vld [vmem:[%s2 + $0x30] sm:$0xff]
        %v391 = vld [vmem:[%s2 + $0x38] sm:$0xff]
        %v392 = vld [vmem:[%s2 + $0x40] sm:$0xff]
        %v393 = vld [vmem:[%s2 + $0x48] sm:$0xff]
        %v394 = vld [vmem:[%s2 + $0x50] sm:$0xff]
        %v395 = vld [vmem:[%s2 + $0x58] sm:$0xff]
        %v396 = vld [vmem:[%s2 + $0x60] sm:$0xff]
        %v397 = vld [vmem:[%s2 + $0x68] sm:$0xff]
        %v398 = vld [vmem:[%s2 + $0x70] sm:$0xff]
        %v399 = vld [vmem:[%s2 + $0x78] sm:$0xff]
        %v400 = vld [vmem:[%s2 + $0x80] sm:$0xff]
        %v401 = vld [vmem:[%s2 + $0x88] sm:$0xff]
        %v402 = vld [vmem:[%s2 + $0x90] sm:$0xff]
        %v403 = vld [vmem:[%s2 + $0x98] sm:$0xff]
        %v404 = vld [vmem:[%s2 + $0xa0] sm:$0xff]
        %v405 = vld [vmem:[%s2 + $0xa8] sm:$0xff]
        %v406 = vld [vmem:[%s2 + $0xb0] sm:$0xff]
        %v407 = vld [vmem:[%s2 + $0xb8] sm:$0xff]
        %v408 = vld [vmem:[%s2 + $0xc0] sm:$0xff]
        %v409 = vld [vmem:[%s2 + $0xc8] sm:$0xff]
        %v410 = vld [vmem:[%s2 + $0xd0] sm:$0xff]
        %v411 = vld [vmem:[%s2 + $0xd8] sm:$0xff]
        %v412 = vld [vmem:[%s2 + $0xe0] sm:$0xff]
        %v413 = vld [vmem:[%s2 + $0xe8] sm:$0xff]
        %v414 = vld [vmem:[%s2 + $0xf0] sm:$0xff]
        %v415 = vld [vmem:[%s2 + $0xf8] sm:$0xff]
        %v416 = vld [vmem:[%s2 + $0x100] sm:$0xff]
        %v417 = vld [vmem:[%s2 + $0x108] sm:$0xff]
        %v418 = vld [vmem:[%s2 + $0x110] sm:$0xff]
        %v419 = vld [vmem:[%s2 + $0x118] sm:$0xff]
        %v420 = vld [vmem:[%s2 + $0x120] sm:$0xff]
        %v421 = vld [vmem:[%s2 + $0x128] sm:$0xff]
        %v422 = vld [vmem:[%s2 + $0x130] sm:$0xff]
        %v423 = vld [vmem:[%s2 + $0x138] sm:$0xff]
        %v424 = vld [vmem:[%s2 + $0x140] sm:$0xff]
        %v425 = vld [vmem:[%s2 + $0x148] sm:$0xff]
        %v426 = vld [vmem:[%s2 + $0x150] sm:$0xff]
        %v427 = vld [vmem:[%s2 + $0x158] sm:$0xff]
        %v428 = vld [vmem:[%s2 + $0x160] sm:$0xff]
        %v429 = vld [vmem:[%s2 + $0x168] sm:$0xff]
        %v430 = vld [vmem:[%s2 + $0x170] sm:$0xff]
        %v431 = vld [vmem:[%s2 + $0x178] sm:$0xff]
        %v432 = vld [vmem:[%s2 + $0x180] sm:$0xff]
        %v433 = vld [vmem:[%s2 + $0x188] sm:$0xff]
        %v434 = vld [vmem:[%s2 + $0x190] sm:$0xff]
        %v435 = vld [vmem:[%s2 + $0x198] sm:$0xff]
        %v436 = vld [vmem:[%s2 + $0x1a0] sm:$0xff]
        %v437 = vld [vmem:[%s2 + $0x1a8] sm:$0xff]
        %v438 = vld [vmem:[%s2 + $0x1b0] sm:$0xff]
        %v439 = vld [vmem:[%s2 + $0x1b8] sm:$0xff]
        %v440 = vld [vmem:[%s2 + $0x1c0] sm:$0xff]
        %v441 = vld [vmem:[%s2 + $0x1c8] sm:$0xff]
        %v442 = vld [vmem:[%s2 + $0x1d0] sm:$0xff]
        %v443 = vld [vmem:[%s2 + $0x1d8] sm:$0xff]
        %v444 = vld [vmem:[%s2 + $0x1e0] sm:$0xff]
        %v445 = vld [vmem:[%s2 + $0x1e8] sm:$0xff]
        %v446 = vld [vmem:[%s2 + $0x1f0] sm:$0xff]
        %v447 = vld [vmem:[%s2 + $0x1f8] sm:$0xff]
        %449 = vset.pattern.permute.xlu0 0
        %450 = vperm.xlu0 %449, %v384
        %v451 = vpop.permute.xlu0 %450
        %454 = vset.pattern.permute.xlu0 0
        %455 = vperm.xlu0 %454, %v385
        %v456 = vpop.permute.xlu0 %455
        %459 = vset.pattern.permute.xlu0 0
        %460 = vperm.xlu0 %459, %v386
        %v461 = vpop.permute.xlu0 %460
        %464 = vset.pattern.permute.xlu0 0
        %465 = vperm.xlu0 %464, %v387
        %v466 = vpop.permute.xlu0 %465
        %469 = vset.pattern.permute.xlu0 0
        %470 = vperm.xlu0 %469, %v388
        %v471 = vpop.permute.xlu0 %470
        %474 = vset.pattern.permute.xlu0 0
        %475 = vperm.xlu0 %474, %v389
        %v476 = vpop.permute.xlu0 %475
        %479 = vset.pattern.permute.xlu0 0
        %480 = vperm.xlu0 %479, %v390
        %v481 = vpop.permute.xlu0 %480
        %484 = vset.pattern.permute.xlu0 0
        %485 = vperm.xlu0 %484, %v391
        %v486 = vpop.permute.xlu0 %485
        %489 = vset.pattern.permute.xlu0 0
        %490 = vperm.xlu0 %489, %v392
        %v491 = vpop.permute.xlu0 %490
        %494 = vset.pattern.permute.xlu0 0
        %495 = vperm.xlu0 %494, %v393
        %v496 = vpop.permute.xlu0 %495
        %499 = vset.pattern.permute.xlu0 0
        %500 = vperm.xlu0 %499, %v394
        %v501 = vpop.permute.xlu0 %500
        %504 = vset.pattern.permute.xlu0 0
        %505 = vperm.xlu0 %504, %v395
        %v506 = vpop.permute.xlu0 %505
        %509 = vset.pattern.permute.xlu0 0
        %510 = vperm.xlu0 %509, %v396
        %v511 = vpop.permute.xlu0 %510
        %514 = vset.pattern.permute.xlu0 0
        %515 = vperm.xlu0 %514, %v397
        %v516 = vpop.permute.xlu0 %515
        %519 = vset.pattern.permute.xlu0 0
        %520 = vperm.xlu0 %519, %v398
        %v521 = vpop.permute.xlu0 %520
        %524 = vset.pattern.permute.xlu0 0
        %525 = vperm.xlu0 %524, %v399
        %v526 = vpop.permute.xlu0 %525
        %529 = vset.pattern.permute.xlu0 0
        %530 = vperm.xlu0 %529, %v400
        %v531 = vpop.permute.xlu0 %530
        %534 = vset.pattern.permute.xlu0 0
        %535 = vperm.xlu0 %534, %v401
        %v536 = vpop.permute.xlu0 %535
        %539 = vset.pattern.permute.xlu0 0
        %540 = vperm.xlu0 %539, %v402
        %v541 = vpop.permute.xlu0 %540
        %544 = vset.pattern.permute.xlu0 0
        %545 = vperm.xlu0 %544, %v403
        %v546 = vpop.permute.xlu0 %545
        %549 = vset.pattern.permute.xlu0 0
        %550 = vperm.xlu0 %549, %v404
        %v551 = vpop.permute.xlu0 %550
        %554 = vset.pattern.permute.xlu0 0
        %555 = vperm.xlu0 %554, %v405
        %v556 = vpop.permute.xlu0 %555
        %559 = vset.pattern.permute.xlu0 0
        %560 = vperm.xlu0 %559, %v406
        %v561 = vpop.permute.xlu0 %560
        %564 = vset.pattern.permute.xlu0 0
        %565 = vperm.xlu0 %564, %v407
        %v566 = vpop.permute.xlu0 %565
        %569 = vset.pattern.permute.xlu0 0
        %570 = vperm.xlu0 %569, %v408
        %v571 = vpop.permute.xlu0 %570
        %574 = vset.pattern.permute.xlu0 0
        %575 = vperm.xlu0 %574, %v409
        %v576 = vpop.permute.xlu0 %575
        %579 = vset.pattern.permute.xlu0 0
        %580 = vperm.xlu0 %579, %v410
        %v581 = vpop.permute.xlu0 %580
        %584 = vset.pattern.permute.xlu0 0
        %585 = vperm.xlu0 %584, %v411
        %v586 = vpop.permute.xlu0 %585
        %589 = vset.pattern.permute.xlu0 0
        %590 = vperm.xlu0 %589, %v412
        %v591 = vpop.permute.xlu0 %590
        %594 = vset.pattern.permute.xlu0 0
        %595 = vperm.xlu0 %594, %v413
        %v596 = vpop.permute.xlu0 %595
        %599 = vset.pattern.permute.xlu0 0
        %600 = vperm.xlu0 %599, %v414
        %v601 = vpop.permute.xlu0 %600
        %604 = vset.pattern.permute.xlu0 0
        %605 = vperm.xlu0 %604, %v415
        %v606 = vpop.permute.xlu0 %605
        %609 = vset.pattern.permute.xlu0 0
        %610 = vperm.xlu0 %609, %v416
        %v611 = vpop.permute.xlu0 %610
        %614 = vset.pattern.permute.xlu0 0
        %615 = vperm.xlu0 %614, %v417
        %v616 = vpop.permute.xlu0 %615
        %619 = vset.pattern.permute.xlu0 0
        %620 = vperm.xlu0 %619, %v418
        %v621 = vpop.permute.xlu0 %620
        %624 = vset.pattern.permute.xlu0 0
        %625 = vperm.xlu0 %624, %v419
        %v626 = vpop.permute.xlu0 %625
        %629 = vset.pattern.permute.xlu0 0
        %630 = vperm.xlu0 %629, %v420
        %v631 = vpop.permute.xlu0 %630
        %634 = vset.pattern.permute.xlu0 0
        %635 = vperm.xlu0 %634, %v421
        %v636 = vpop.permute.xlu0 %635
        %639 = vset.pattern.permute.xlu0 0
        %640 = vperm.xlu0 %639, %v422
        %v641 = vpop.permute.xlu0 %640
        %644 = vset.pattern.permute.xlu0 0
        %645 = vperm.xlu0 %644, %v423
        %v646 = vpop.permute.xlu0 %645
        %649 = vset.pattern.permute.xlu0 0
        %650 = vperm.xlu0 %649, %v424
        %v651 = vpop.permute.xlu0 %650
        %654 = vset.pattern.permute.xlu0 0
        %655 = vperm.xlu0 %654, %v425
        %v656 = vpop.permute.xlu0 %655
        %659 = vset.pattern.permute.xlu0 0
        %660 = vperm.xlu0 %659, %v426
        %v661 = vpop.permute.xlu0 %660
        %664 = vset.pattern.permute.xlu0 0
        %665 = vperm.xlu0 %664, %v427
        %v666 = vpop.permute.xlu0 %665
        %669 = vset.pattern.permute.xlu0 0
        %670 = vperm.xlu0 %669, %v428
        %v671 = vpop.permute.xlu0 %670
        %674 = vset.pattern.permute.xlu0 0
        %675 = vperm.xlu0 %674, %v429
        %v676 = vpop.permute.xlu0 %675
        %679 = vset.pattern.permute.xlu0 0
        %680 = vperm.xlu0 %679, %v430
        %v681 = vpop.permute.xlu0 %680
        %684 = vset.pattern.permute.xlu0 0
        %685 = vperm.xlu0 %684, %v431
        %v686 = vpop.permute.xlu0 %685
        %689 = vset.pattern.permute.xlu0 0
        %690 = vperm.xlu0 %689, %v432
        %v691 = vpop.permute.xlu0 %690
        %694 = vset.pattern.permute.xlu0 0
        %695 = vperm.xlu0 %694, %v433
        %v696 = vpop.permute.xlu0 %695
        %699 = vset.pattern.permute.xlu0 0
        %700 = vperm.xlu0 %699, %v434
        %v701 = vpop.permute.xlu0 %700
        %704 = vset.pattern.permute.xlu0 0
        %705 = vperm.xlu0 %704, %v435
        %v706 = vpop.permute.xlu0 %705
        %709 = vset.pattern.permute.xlu0 0
        %710 = vperm.xlu0 %709, %v436
        %v711 = vpop.permute.xlu0 %710
        %714 = vset.pattern.permute.xlu0 0
        %715 = vperm.xlu0 %714, %v437
        %v716 = vpop.permute.xlu0 %715
        %719 = vset.pattern.permute.xlu0 0
        %720 = vperm.xlu0 %719, %v438
        %v721 = vpop.permute.xlu0 %720
        %724 = vset.pattern.permute.xlu0 0
        %725 = vperm.xlu0 %724, %v439
        %v726 = vpop.permute.xlu0 %725
        %729 = vset.pattern.permute.xlu0 0
        %730 = vperm.xlu0 %729, %v440
        %v731 = vpop.permute.xlu0 %730
        %734 = vset.pattern.permute.xlu0 0
        %735 = vperm.xlu0 %734, %v441
        %v736 = vpop.permute.xlu0 %735
        %739 = vset.pattern.permute.xlu0 0
        %740 = vperm.xlu0 %739, %v442
        %v741 = vpop.permute.xlu0 %740
        %744 = vset.pattern.permute.xlu0 0
        %745 = vperm.xlu0 %744, %v443
        %v746 = vpop.permute.xlu0 %745
        %749 = vset.pattern.permute.xlu0 0
        %750 = vperm.xlu0 %749, %v444
        %v751 = vpop.permute.xlu0 %750
        %754 = vset.pattern.permute.xlu0 0
        %755 = vperm.xlu0 %754, %v445
        %v756 = vpop.permute.xlu0 %755
        %759 = vset.pattern.permute.xlu0 0
        %760 = vperm.xlu0 %759, %v446
        %v761 = vpop.permute.xlu0 %760
        %764 = vset.pattern.permute.xlu0 0
        %765 = vperm.xlu0 %764, %v447
        %v766 = vpop.permute.xlu0 %765
        %v832 = vunpack.c.l.b16 %v301
        %v833 = vunpack.c.h.b16 %v301
        %v834 = vunpack.c.l.b16 %v302
        %v835 = vunpack.c.h.b16 %v302
        %v836 = vunpack.c.l.b16 %v303
        %v837 = vunpack.c.h.b16 %v303
        %v838 = vunpack.c.l.b16 %v304
        %v839 = vunpack.c.h.b16 %v304
        %v840 = vunpack.c.l.b16 %v305
        %v841 = vunpack.c.h.b16 %v305
        %v842 = vunpack.c.l.b16 %v306
        %v843 = vunpack.c.h.b16 %v306
        %v844 = vunpack.c.l.b16 %v307
        %v845 = vunpack.c.h.b16 %v307
        %v846 = vunpack.c.l.b16 %v308
        %v847 = vunpack.c.h.b16 %v308
        %v848 = vunpack.c.l.b16 %v309
        %v849 = vunpack.c.h.b16 %v309
        %v850 = vunpack.c.l.b16 %v310
        %v851 = vunpack.c.h.b16 %v310
        %v852 = vunpack.c.l.b16 %v311
        %v853 = vunpack.c.h.b16 %v311
        %v854 = vunpack.c.l.b16 %v312
        %v855 = vunpack.c.h.b16 %v312
        %v856 = vunpack.c.l.b16 %v313
        %v857 = vunpack.c.h.b16 %v313
        %v858 = vunpack.c.l.b16 %v314
        %v859 = vunpack.c.h.b16 %v314
        %v860 = vunpack.c.l.b16 %v315
        %v861 = vunpack.c.h.b16 %v315
        %v862 = vunpack.c.l.b16 %v316
        %v863 = vunpack.c.h.b16 %v316
        %v864 = vunpack.c.l.b16 %v317
        %v865 = vunpack.c.h.b16 %v317
        %v866 = vunpack.c.l.b16 %v318
        %v867 = vunpack.c.h.b16 %v318
        %v868 = vunpack.c.l.b16 %v319
        %v869 = vunpack.c.h.b16 %v319
        %v870 = vunpack.c.l.b16 %v320
        %v871 = vunpack.c.h.b16 %v320
        %v872 = vunpack.c.l.b16 %v321
        %v873 = vunpack.c.h.b16 %v321
        %v874 = vunpack.c.l.b16 %v322
        %v875 = vunpack.c.h.b16 %v322
        %v876 = vunpack.c.l.b16 %v323
        %v877 = vunpack.c.h.b16 %v323
        %v878 = vunpack.c.l.b16 %v324
        %v879 = vunpack.c.h.b16 %v324
        %v880 = vunpack.c.l.b16 %v325
        %v881 = vunpack.c.h.b16 %v325
        %v882 = vunpack.c.l.b16 %v326
        %v883 = vunpack.c.h.b16 %v326
        %v884 = vunpack.c.l.b16 %v327
        %v885 = vunpack.c.h.b16 %v327
        %v886 = vunpack.c.l.b16 %v328
        %v887 = vunpack.c.h.b16 %v328
        %v888 = vunpack.c.l.b16 %v329
        %v889 = vunpack.c.h.b16 %v329
        %v890 = vunpack.c.l.b16 %v330
        %v891 = vunpack.c.h.b16 %v330
        %v892 = vunpack.c.l.b16 %v331
        %v893 = vunpack.c.h.b16 %v331
        %v894 = vunpack.c.l.b16 %v332
        %v895 = vunpack.c.h.b16 %v332
        %v896 = vunpack.c.l.b16 %v333
        %v897 = vunpack.c.h.b16 %v333
        %v898 = vunpack.c.l.b16 %v334
        %v899 = vunpack.c.h.b16 %v334
        %v900 = vunpack.c.l.b16 %v335
        %v901 = vunpack.c.h.b16 %v335
        %v902 = vunpack.c.l.b16 %v336
        %v903 = vunpack.c.h.b16 %v336
        %v904 = vunpack.c.l.b16 %v337
        %v905 = vunpack.c.h.b16 %v337
        %v906 = vunpack.c.l.b16 %v338
        %v907 = vunpack.c.h.b16 %v338
        %v908 = vunpack.c.l.b16 %v339
        %v909 = vunpack.c.h.b16 %v339
        %v910 = vunpack.c.l.b16 %v340
        %v911 = vunpack.c.h.b16 %v340
        %v912 = vunpack.c.l.b16 %v341
        %v913 = vunpack.c.h.b16 %v341
        %v914 = vunpack.c.l.b16 %v342
        %v915 = vunpack.c.h.b16 %v342
        %v916 = vunpack.c.l.b16 %v343
        %v917 = vunpack.c.h.b16 %v343
        %v918 = vunpack.c.l.b16 %v344
        %v919 = vunpack.c.h.b16 %v344
        %v920 = vunpack.c.l.b16 %v345
        %v921 = vunpack.c.h.b16 %v345
        %v922 = vunpack.c.l.b16 %v346
        %v923 = vunpack.c.h.b16 %v346
        %v924 = vunpack.c.l.b16 %v347
        %v925 = vunpack.c.h.b16 %v347
        %v926 = vunpack.c.l.b16 %v348
        %v927 = vunpack.c.h.b16 %v348
        %v928 = vunpack.c.l.b16 %v349
        %v929 = vunpack.c.h.b16 %v349
        %v930 = vunpack.c.l.b16 %v350
        %v931 = vunpack.c.h.b16 %v350
        %v932 = vunpack.c.l.b16 %v351
        %v933 = vunpack.c.h.b16 %v351
        %v934 = vunpack.c.l.b16 %v352
        %v935 = vunpack.c.h.b16 %v352
        %v936 = vunpack.c.l.b16 %v353
        %v937 = vunpack.c.h.b16 %v353
        %v938 = vunpack.c.l.b16 %v354
        %v939 = vunpack.c.h.b16 %v354
        %v940 = vunpack.c.l.b16 %v355
        %v941 = vunpack.c.h.b16 %v355
        %v942 = vunpack.c.l.b16 %v356
        %v943 = vunpack.c.h.b16 %v356
        %v944 = vunpack.c.l.b16 %v357
        %v945 = vunpack.c.h.b16 %v357
        %v946 = vunpack.c.l.b16 %v358
        %v947 = vunpack.c.h.b16 %v358
        %v948 = vunpack.c.l.b16 %v359
        %v949 = vunpack.c.h.b16 %v359
        %v950 = vunpack.c.l.b16 %v360
        %v951 = vunpack.c.h.b16 %v360
        %v952 = vunpack.c.l.b16 %v361
        %v953 = vunpack.c.h.b16 %v361
        %v954 = vunpack.c.l.b16 %v362
        %v955 = vunpack.c.h.b16 %v362
        %v956 = vunpack.c.l.b16 %v363
        %v957 = vunpack.c.h.b16 %v363
        %v958 = vunpack.c.l.b16 %v364
        %v959 = vunpack.c.h.b16 %v364
        %v960 = vpack.c.b16 %v834, %v832
        %v961 = vpack.c.b16 %v835, %v833
        %v962 = vpack.c.b16 %v838, %v836
        %v963 = vpack.c.b16 %v839, %v837
        %v964 = vpack.c.b16 %v842, %v840
        %v965 = vpack.c.b16 %v843, %v841
        %v966 = vpack.c.b16 %v846, %v844
        %v967 = vpack.c.b16 %v847, %v845
        %v968 = vpack.c.b16 %v850, %v848
        %v969 = vpack.c.b16 %v851, %v849
        %v970 = vpack.c.b16 %v854, %v852
        %v971 = vpack.c.b16 %v855, %v853
        %v972 = vpack.c.b16 %v858, %v856
        %v973 = vpack.c.b16 %v859, %v857
        %v974 = vpack.c.b16 %v862, %v860
        %v975 = vpack.c.b16 %v863, %v861
        %v976 = vpack.c.b16 %v866, %v864
        %v977 = vpack.c.b16 %v867, %v865
        %v978 = vpack.c.b16 %v870, %v868
        %v979 = vpack.c.b16 %v871, %v869
        %v980 = vpack.c.b16 %v874, %v872
        %v981 = vpack.c.b16 %v875, %v873
        %v982 = vpack.c.b16 %v878, %v876
        %v983 = vpack.c.b16 %v879, %v877
        %v984 = vpack.c.b16 %v882, %v880
        %v985 = vpack.c.b16 %v883, %v881
        %v986 = vpack.c.b16 %v886, %v884
        %v987 = vpack.c.b16 %v887, %v885
        %v988 = vpack.c.b16 %v890, %v888
        %v989 = vpack.c.b16 %v891, %v889
        %v990 = vpack.c.b16 %v894, %v892
        %v991 = vpack.c.b16 %v895, %v893
        %v992 = vpack.c.b16 %v898, %v896
        %v993 = vpack.c.b16 %v899, %v897
        %v994 = vpack.c.b16 %v902, %v900
        %v995 = vpack.c.b16 %v903, %v901
        %v996 = vpack.c.b16 %v906, %v904
        %v997 = vpack.c.b16 %v907, %v905
        %v998 = vpack.c.b16 %v910, %v908
        %v999 = vpack.c.b16 %v911, %v909
        %v1000 = vpack.c.b16 %v914, %v912
        %v1001 = vpack.c.b16 %v915, %v913
        %v1002 = vpack.c.b16 %v918, %v916
        %v1003 = vpack.c.b16 %v919, %v917
        %v1004 = vpack.c.b16 %v922, %v920
        %v1005 = vpack.c.b16 %v923, %v921
        %v1006 = vpack.c.b16 %v926, %v924
        %v1007 = vpack.c.b16 %v927, %v925
        %v1008 = vpack.c.b16 %v930, %v928
        %v1009 = vpack.c.b16 %v931, %v929
        %v1010 = vpack.c.b16 %v934, %v932
        %v1011 = vpack.c.b16 %v935, %v933
        %v1012 = vpack.c.b16 %v938, %v936
        %v1013 = vpack.c.b16 %v939, %v937
        %v1014 = vpack.c.b16 %v942, %v940
        %v1015 = vpack.c.b16 %v943, %v941
        %v1016 = vpack.c.b16 %v946, %v944
        %v1017 = vpack.c.b16 %v947, %v945
        %v1018 = vpack.c.b16 %v950, %v948
        %v1019 = vpack.c.b16 %v951, %v949
        %v1020 = vpack.c.b16 %v954, %v952
        %v1021 = vpack.c.b16 %v955, %v953
        %v1022 = vpack.c.b16 %v958, %v956
        %v1023 = vpack.c.b16 %v959, %v957
        %v1075 = vunpack.c.l.b16 %v365
        %v1076 = vunpack.c.l.b16 %v366
        %v1077 = vunpack.c.l.b16 %v367
        %v1078 = vunpack.c.l.b16 %v368
        %v1079 = vunpack.c.l.b16 %v369
        %v1080 = vunpack.c.l.b16 %v370
        %v1081 = vunpack.c.l.b16 %v371
        %v1082 = vunpack.c.l.b16 %v372
        %v1083 = vunpack.c.l.b16 %v373
        %v1084 = vunpack.c.l.b16 %v374
        %v1085 = vunpack.c.l.b16 %v375
        %v1086 = vunpack.c.l.b16 %v376
        %v1087 = vunpack.c.l.b16 %v377
        %v1088 = vunpack.c.l.b16 %v378
        %v1089 = vunpack.c.l.b16 %v379
        %v1090 = vunpack.c.l.b16 %v380
        %v1091 = vunpack.c.l.b16 %v381
        %v1092 = vunpack.c.l.b16 %v382
        %v1093 = vunpack.c.l.b16 %v383
        %v1094 = vpack.c.b16 %v1076, %v1075
        %v1095 = vpack.c.b16 %v1078, %v1077
        %v1096 = vpack.c.b16 %v1080, %v1079
        %v1097 = vpack.c.b16 %v1082, %v1081
        %v1098 = vpack.c.b16 %v1084, %v1083
        %v1099 = vpack.c.b16 %v1086, %v1085
        %v1100 = vpack.c.b16 %v1088, %v1087
        %v1101 = vpack.c.b16 %v1090, %v1089
        %v1102 = vpack.c.b16 %v1092, %v1091
        %v1103 = vpack.c.b16 %v1093, %v1093
        %vm1113 = vcmask 154624
        %v1115 = vsel %vm1113, %v961, 0
        %v1118 = vsel %vm1113, %v963, 0
        %v1121 = vsel %vm1113, %v965, 0
        %v1124 = vsel %vm1113, %v967, 0
        %v1127 = vsel %vm1113, %v969, 0
        %v1130 = vsel %vm1113, %v971, 0
        %v1133 = vsel %vm1113, %v973, 0
        %v1136 = vsel %vm1113, %v975, 0
        %v1139 = vsel %vm1113, %v977, 0
        %v1142 = vsel %vm1113, %v979, 0
        %v1145 = vsel %vm1113, %v981, 0
        %v1148 = vsel %vm1113, %v983, 0
        %v1151 = vsel %vm1113, %v985, 0
        %v1154 = vsel %vm1113, %v987, 0
        %v1157 = vsel %vm1113, %v989, 0
        %v1160 = vsel %vm1113, %v991, 0
        %v1163 = vsel %vm1113, %v993, 0
        %v1166 = vsel %vm1113, %v995, 0
        %v1169 = vsel %vm1113, %v997, 0
        %v1172 = vsel %vm1113, %v999, 0
        %v1175 = vsel %vm1113, %v1001, 0
        %v1178 = vsel %vm1113, %v1003, 0
        %v1181 = vsel %vm1113, %v1005, 0
        %v1184 = vsel %vm1113, %v1007, 0
        %v1187 = vsel %vm1113, %v1009, 0
        %v1190 = vsel %vm1113, %v1011, 0
        %v1193 = vsel %vm1113, %v1013, 0
        %v1196 = vsel %vm1113, %v1015, 0
        %v1199 = vsel %vm1113, %v1017, 0
        %v1202 = vsel %vm1113, %v1019, 0
        %v1205 = vsel %vm1113, %v1021, 0
        %v1208 = vsel %vm1113, %v1023, 0
        %vm1210 = vcmask 1040384
        %vm1211 = vcmask 1041408
        %v1212 = vsel %vm1210, 4294967295, 65535
        %v1213 = vsel %vm1211, %v1212, 0
        %v1215 = vand.u32 %v1103, %v1213
        %1217 = vmatprep.subr.bf16.mxu0 0
        %1218 = vmatpush1.bf16.msra.mxu0 %v1094
        %1219 = vmatprep.subr.bf16.mxu0 0
        %1220 = vmatpush1.bf16.msra.mxu0 %v1095
        %1221 = vmatprep.subr.bf16.mxu0 0
        %1222 = vmatpush1.bf16.msra.mxu0 %v1096
        %1223 = vmatprep.subr.bf16.mxu0 0
        %1224 = vmatpush1.bf16.msra.mxu0 %v1097
        %1225 = vmatprep.subr.bf16.mxu0 0
        %1226 = vmatpush1.bf16.msra.mxu0 %v1098
        %1227 = vmatprep.subr.bf16.mxu0 0
        %1228 = vmatpush1.bf16.msra.mxu0 %v1099
        %1229 = vmatprep.subr.bf16.mxu0 0
        %1230 = vmatpush1.bf16.msra.mxu0 %v1100
        %1231 = vmatprep.subr.bf16.mxu0 0
        %1232 = vmatpush1.bf16.msra.mxu0 %v1101
        %1233 = vmatprep.subr.bf16.mxu0 0
        %1234 = vmatpush1.bf16.msra.mxu0 %v1102
        %1235 = vmatprep.subr.bf16.mxu0 0
        %1236 = vmatpush1.bf16.msra.mxu0 %v1215
        %1237 = vmatprep.subr.bf16.mxu0 0
        %1238 = vmatpush1.bf16.msra.mxu0 0
        %1239 = vmatprep.subr.bf16.mxu0 0
        %1240 = vmatpush1.bf16.msra.mxu0 0
        %1241 = vmatprep.subr.bf16.mxu0 0
        %1242 = vmatpush1.bf16.msra.mxu0 0
        %1243 = vmatprep.subr.bf16.mxu0 0
        %1244 = vmatpush1.bf16.msra.mxu0 0
        %1245 = vmatprep.subr.bf16.mxu0 0
        %1246 = vmatpush1.bf16.msra.mxu0 0
        %1247 = vmatprep.subr.bf16.mxu0 0
        %1248 = vmatpush1.bf16.msra.mxu0 0
        %1249 = vmatprep.mubr.bf16.mxu0 %v1115
        %1250 = vmatmul.mubr.bf16.gmra.mrb[0].mxu0 %v960
        %v1251 = vpop.f32.mrb[0].mxu0
        %v1252 = vadd.f32 %v451, %v1251
        %v1253 = vpop.f32.mrb[0].mxu0
        %v1254 = vpop.f32.mrb[0].mxu0
        %v1255 = vadd.f32 %v456, %v1254
        %v1256 = vpop.f32.mrb[0].mxu0
        %1257 = vmatprep.mubr.bf16.mxu0 %v1118
        %1258 = vmatmul.mubr.bf16.gmra.mrb[0].mxu0 %v962
        %v1259 = vpop.f32.mrb[0].mxu0
        %v1260 = vadd.f32 %v461, %v1259
        %v1261 = vpop.f32.mrb[0].mxu0
        %v1262 = vpop.f32.mrb[0].mxu0
        %v1263 = vadd.f32 %v466, %v1262
        %v1264 = vpop.f32.mrb[0].mxu0
        %1265 = vmatprep.mubr.bf16.mxu0 %v1121
        %1266 = vmatmul.mubr.bf16.gmra.mrb[0].mxu0 %v964
        %v1267 = vpop.f32.mrb[0].mxu0
        %v1268 = vadd.f32 %v471, %v1267
        %v1269 = vpop.f32.mrb[0].mxu0
        %v1270 = vpop.f32.mrb[0].mxu0
        %v1271 = vadd.f32 %v476, %v1270
        %v1272 = vpop.f32.mrb[0].mxu0
        %1273 = vmatprep.mubr.bf16.mxu0 %v1124
        %1274 = vmatmul.mubr.bf16.gmra.mrb[0].mxu0 %v966
        %v1275 = vpop.f32.mrb[0].mxu0
        %v1276 = vadd.f32 %v481, %v1275
        %v1277 = vpop.f32.mrb[0].mxu0
        %v1278 = vpop.f32.mrb[0].mxu0
        %v1279 = vadd.f32 %v486, %v1278
        %v1280 = vpop.f32.mrb[0].mxu0
        %1281 = vmatprep.mubr.bf16.mxu0 %v1127
        %1282 = vmatmul.mubr.bf16.gmra.mrb[0].mxu0 %v968
        %v1283 = vpop.f32.mrb[0].mxu0
        %v1284 = vadd.f32 %v491, %v1283
        %v1285 = vpop.f32.mrb[0].mxu0
        %v1286 = vpop.f32.mrb[0].mxu0
        %v1287 = vadd.f32 %v496, %v1286
        %v1288 = vpop.f32.mrb[0].mxu0
        %1289 = vmatprep.mubr.bf16.mxu0 %v1130
        %1290 = vmatmul.mubr.bf16.gmra.mrb[0].mxu0 %v970
        %v1291 = vpop.f32.mrb[0].mxu0
        %v1292 = vadd.f32 %v501, %v1291
        %v1293 = vpop.f32.mrb[0].mxu0
        %v1294 = vpop.f32.mrb[0].mxu0
        %v1295 = vadd.f32 %v506, %v1294
        %v1296 = vpop.f32.mrb[0].mxu0
        %1297 = vmatprep.mubr.bf16.mxu0 %v1133
        %1298 = vmatmul.mubr.bf16.gmra.mrb[0].mxu0 %v972
        %v1299 = vpop.f32.mrb[0].mxu0
        %v1300 = vadd.f32 %v511, %v1299
        %v1301 = vpop.f32.mrb[0].mxu0
        %v1302 = vpop.f32.mrb[0].mxu0
        %v1303 = vadd.f32 %v516, %v1302
        %v1304 = vpop.f32.mrb[0].mxu0
        %1305 = vmatprep.mubr.bf16.mxu0 %v1136
        %1306 = vmatmul.mubr.bf16.gmra.mrb[0].mxu0 %v974
        %v1307 = vpop.f32.mrb[0].mxu0
        %v1308 = vadd.f32 %v521, %v1307
        %v1309 = vpop.f32.mrb[0].mxu0
        %v1310 = vpop.f32.mrb[0].mxu0
        %v1311 = vadd.f32 %v526, %v1310
        %v1312 = vpop.f32.mrb[0].mxu0
        %1313 = vmatprep.mubr.bf16.mxu0 %v1139
        %1314 = vmatmul.mubr.bf16.gmra.mrb[0].mxu0 %v976
        %v1315 = vpop.f32.mrb[0].mxu0
        %v1316 = vadd.f32 %v531, %v1315
        %v1317 = vpop.f32.mrb[0].mxu0
        %v1318 = vpop.f32.mrb[0].mxu0
        %v1319 = vadd.f32 %v536, %v1318
        %v1320 = vpop.f32.mrb[0].mxu0
        %1321 = vmatprep.mubr.bf16.mxu0 %v1142
        %1322 = vmatmul.mubr.bf16.gmra.mrb[0].mxu0 %v978
        %v1323 = vpop.f32.mrb[0].mxu0
        %v1324 = vadd.f32 %v541, %v1323
        %v1325 = vpop.f32.mrb[0].mxu0
        %v1326 = vpop.f32.mrb[0].mxu0
        %v1327 = vadd.f32 %v546, %v1326
        %v1328 = vpop.f32.mrb[0].mxu0
        %1329 = vmatprep.mubr.bf16.mxu0 %v1145
        %1330 = vmatmul.mubr.bf16.gmra.mrb[0].mxu0 %v980
        %v1331 = vpop.f32.mrb[0].mxu0
        %v1332 = vadd.f32 %v551, %v1331
        %v1333 = vpop.f32.mrb[0].mxu0
        %v1334 = vpop.f32.mrb[0].mxu0
        %v1335 = vadd.f32 %v556, %v1334
        %v1336 = vpop.f32.mrb[0].mxu0
        %1337 = vmatprep.mubr.bf16.mxu0 %v1148
        %1338 = vmatmul.mubr.bf16.gmra.mrb[0].mxu0 %v982
        %v1339 = vpop.f32.mrb[0].mxu0
        %v1340 = vadd.f32 %v561, %v1339
        %v1341 = vpop.f32.mrb[0].mxu0
        %v1342 = vpop.f32.mrb[0].mxu0
        %v1343 = vadd.f32 %v566, %v1342
        %v1344 = vpop.f32.mrb[0].mxu0
        %1345 = vmatprep.mubr.bf16.mxu0 %v1151
        %1346 = vmatmul.mubr.bf16.gmra.mrb[0].mxu0 %v984
        %v1347 = vpop.f32.mrb[0].mxu0
        %v1348 = vadd.f32 %v571, %v1347
        %v1349 = vpop.f32.mrb[0].mxu0
        %v1350 = vpop.f32.mrb[0].mxu0
        %v1351 = vadd.f32 %v576, %v1350
        %v1352 = vpop.f32.mrb[0].mxu0
        %1353 = vmatprep.mubr.bf16.mxu0 %v1154
        %1354 = vmatmul.mubr.bf16.gmra.mrb[0].mxu0 %v986
        %v1355 = vpop.f32.mrb[0].mxu0
        %v1356 = vadd.f32 %v581, %v1355
        %v1357 = vpop.f32.mrb[0].mxu0
        %v1358 = vpop.f32.mrb[0].mxu0
        %v1359 = vadd.f32 %v586, %v1358
        %v1360 = vpop.f32.mrb[0].mxu0
        %1361 = vmatprep.mubr.bf16.mxu0 %v1157
        %1362 = vmatmul.mubr.bf16.gmra.mrb[0].mxu0 %v988
        %v1363 = vpop.f32.mrb[0].mxu0
        %v1364 = vadd.f32 %v591, %v1363
        %v1365 = vpop.f32.mrb[0].mxu0
        %v1366 = vpop.f32.mrb[0].mxu0
        %v1367 = vadd.f32 %v596, %v1366
        %v1368 = vpop.f32.mrb[0].mxu0
        %1369 = vmatprep.mubr.bf16.mxu0 %v1160
        %1370 = vmatmul.mubr.bf16.gmra.mrb[0].mxu0 %v990
        %v1371 = vpop.f32.mrb[0].mxu0
        %v1372 = vadd.f32 %v601, %v1371
        %v1373 = vpop.f32.mrb[0].mxu0
        %v1374 = vpop.f32.mrb[0].mxu0
        %v1375 = vadd.f32 %v606, %v1374
        %v1376 = vpop.f32.mrb[0].mxu0
        %1377 = vmatprep.mubr.bf16.mxu0 %v1163
        %1378 = vmatmul.mubr.bf16.gmra.mrb[0].mxu0 %v992
        %v1379 = vpop.f32.mrb[0].mxu0
        %v1380 = vadd.f32 %v611, %v1379
        %v1381 = vpop.f32.mrb[0].mxu0
        %v1382 = vpop.f32.mrb[0].mxu0
        %v1383 = vadd.f32 %v616, %v1382
        %v1384 = vpop.f32.mrb[0].mxu0
        %1385 = vmatprep.mubr.bf16.mxu0 %v1166
        %1386 = vmatmul.mubr.bf16.gmra.mrb[0].mxu0 %v994
        %v1387 = vpop.f32.mrb[0].mxu0
        %v1388 = vadd.f32 %v621, %v1387
        %v1389 = vpop.f32.mrb[0].mxu0
        %v1390 = vpop.f32.mrb[0].mxu0
        %v1391 = vadd.f32 %v626, %v1390
        %v1392 = vpop.f32.mrb[0].mxu0
        %1393 = vmatprep.mubr.bf16.mxu0 %v1169
        %1394 = vmatmul.mubr.bf16.gmra.mrb[0].mxu0 %v996
        %v1395 = vpop.f32.mrb[0].mxu0
        %v1396 = vadd.f32 %v631, %v1395
        %v1397 = vpop.f32.mrb[0].mxu0
        %v1398 = vpop.f32.mrb[0].mxu0
        %v1399 = vadd.f32 %v636, %v1398
        %v1400 = vpop.f32.mrb[0].mxu0
        %1401 = vmatprep.mubr.bf16.mxu0 %v1172
        %1402 = vmatmul.mubr.bf16.gmra.mrb[0].mxu0 %v998
        %v1403 = vpop.f32.mrb[0].mxu0
        %v1404 = vadd.f32 %v641, %v1403
        %v1405 = vpop.f32.mrb[0].mxu0
        %v1406 = vpop.f32.mrb[0].mxu0
        %v1407 = vadd.f32 %v646, %v1406
        %v1408 = vpop.f32.mrb[0].mxu0
        %1409 = vmatprep.mubr.bf16.mxu0 %v1175
        %1410 = vmatmul.mubr.bf16.gmra.mrb[0].mxu0 %v1000
        %v1411 = vpop.f32.mrb[0].mxu0
        %v1412 = vadd.f32 %v651, %v1411
        %v1413 = vpop.f32.mrb[0].mxu0
        %v1414 = vpop.f32.mrb[0].mxu0
        %v1415 = vadd.f32 %v656, %v1414
        %v1416 = vpop.f32.mrb[0].mxu0
        %1417 = vmatprep.mubr.bf16.mxu0 %v1178
        %1418 = vmatmul.mubr.bf16.gmra.mrb[0].mxu0 %v1002
        %v1419 = vpop.f32.mrb[0].mxu0
        %v1420 = vadd.f32 %v661, %v1419
        %v1421 = vpop.f32.mrb[0].mxu0
        %v1422 = vpop.f32.mrb[0].mxu0
        %v1423 = vadd.f32 %v666, %v1422
        %v1424 = vpop.f32.mrb[0].mxu0
        %1425 = vmatprep.mubr.bf16.mxu0 %v1181
        %1426 = vmatmul.mubr.bf16.gmra.mrb[0].mxu0 %v1004
        %v1427 = vpop.f32.mrb[0].mxu0
        %v1428 = vadd.f32 %v671, %v1427
        %v1429 = vpop.f32.mrb[0].mxu0
        %v1430 = vpop.f32.mrb[0].mxu0
        %v1431 = vadd.f32 %v676, %v1430
        %v1432 = vpop.f32.mrb[0].mxu0
        %1433 = vmatprep.mubr.bf16.mxu0 %v1184
        %1434 = vmatmul.mubr.bf16.gmra.mrb[0].mxu0 %v1006
        %v1435 = vpop.f32.mrb[0].mxu0
        %v1436 = vadd.f32 %v681, %v1435
        %v1437 = vpop.f32.mrb[0].mxu0
        %v1438 = vpop.f32.mrb[0].mxu0
        %v1439 = vadd.f32 %v686, %v1438
        %v1440 = vpop.f32.mrb[0].mxu0
        %1441 = vmatprep.mubr.bf16.mxu0 %v1187
        %1442 = vmatmul.mubr.bf16.gmra.mrb[0].mxu0 %v1008
        %v1443 = vpop.f32.mrb[0].mxu0
        %v1444 = vadd.f32 %v691, %v1443
        %v1445 = vpop.f32.mrb[0].mxu0
        %v1446 = vpop.f32.mrb[0].mxu0
        %v1447 = vadd.f32 %v696, %v1446
        %v1448 = vpop.f32.mrb[0].mxu0
        %1449 = vmatprep.mubr.bf16.mxu0 %v1190
        %1450 = vmatmul.mubr.bf16.gmra.mrb[0].mxu0 %v1010
        %v1451 = vpop.f32.mrb[0].mxu0
        %v1452 = vadd.f32 %v701, %v1451
        %v1453 = vpop.f32.mrb[0].mxu0
        %v1454 = vpop.f32.mrb[0].mxu0
        %v1455 = vadd.f32 %v706, %v1454
        %v1456 = vpop.f32.mrb[0].mxu0
        %1457 = vmatprep.mubr.bf16.mxu0 %v1193
        %1458 = vmatmul.mubr.bf16.gmra.mrb[0].mxu0 %v1012
        %v1459 = vpop.f32.mrb[0].mxu0
        %v1460 = vadd.f32 %v711, %v1459
        %v1461 = vpop.f32.mrb[0].mxu0
        %v1462 = vpop.f32.mrb[0].mxu0
        %v1463 = vadd.f32 %v716, %v1462
        %v1464 = vpop.f32.mrb[0].mxu0
        %1465 = vmatprep.mubr.bf16.mxu0 %v1196
        %1466 = vmatmul.mubr.bf16.gmra.mrb[0].mxu0 %v1014
        %v1467 = vpop.f32.mrb[0].mxu0
        %v1468 = vadd.f32 %v721, %v1467
        %v1469 = vpop.f32.mrb[0].mxu0
        %v1470 = vpop.f32.mrb[0].mxu0
        %v1471 = vadd.f32 %v726, %v1470
        %v1472 = vpop.f32.mrb[0].mxu0
        %1473 = vmatprep.mubr.bf16.mxu0 %v1199
        %1474 = vmatmul.mubr.bf16.gmra.mrb[0].mxu0 %v1016
        %v1475 = vpop.f32.mrb[0].mxu0
        %v1476 = vadd.f32 %v731, %v1475
        %v1477 = vpop.f32.mrb[0].mxu0
        %v1478 = vpop.f32.mrb[0].mxu0
        %v1479 = vadd.f32 %v736, %v1478
        %v1480 = vpop.f32.mrb[0].mxu0
        %1481 = vmatprep.mubr.bf16.mxu0 %v1202
        %1482 = vmatmul.mubr.bf16.gmra.mrb[0].mxu0 %v1018
        %v1483 = vpop.f32.mrb[0].mxu0
        %v1484 = vadd.f32 %v741, %v1483
        %v1485 = vpop.f32.mrb[0].mxu0
        %v1486 = vpop.f32.mrb[0].mxu0
        %v1487 = vadd.f32 %v746, %v1486
        %v1488 = vpop.f32.mrb[0].mxu0
        %1489 = vmatprep.mubr.bf16.mxu0 %v1205
        %1490 = vmatmul.mubr.bf16.gmra.mrb[0].mxu0 %v1020
        %v1491 = vpop.f32.mrb[0].mxu0
        %v1492 = vadd.f32 %v751, %v1491
        %v1493 = vpop.f32.mrb[0].mxu0
        %v1494 = vpop.f32.mrb[0].mxu0
        %v1495 = vadd.f32 %v756, %v1494
        %v1496 = vpop.f32.mrb[0].mxu0
        %1497 = vmatprep.mubr.bf16.mxu0 %v1208
        %1498 = vmatmul.mubr.bf16.gmra.mrb[0].mxu0 %v1022
        %v1499 = vpop.f32.mrb[0].mxu0
        %v1500 = vadd.f32 %v761, %v1499
        %v1501 = vpop.f32.mrb[0].mxu0
        %v1502 = vpop.f32.mrb[0].mxu0
        %v1503 = vadd.f32 %v766, %v1502
        %v1504 = vpop.f32.mrb[0].mxu0
        %1505 = vdwg.mxu0
        %v1506 = vmax.f32 %v1252, 0.0
        %v1507 = vmax.f32 %v1255, 0.0
        %v1508 = vmax.f32 %v1260, 0.0
        %v1509 = vmax.f32 %v1263, 0.0
        %v1510 = vmax.f32 %v1268, 0.0
        %v1511 = vmax.f32 %v1271, 0.0
        %v1512 = vmax.f32 %v1276, 0.0
        %v1513 = vmax.f32 %v1279, 0.0
        %v1514 = vmax.f32 %v1284, 0.0
        %v1515 = vmax.f32 %v1287, 0.0
        %v1516 = vmax.f32 %v1292, 0.0
        %v1517 = vmax.f32 %v1295, 0.0
        %v1518 = vmax.f32 %v1300, 0.0
        %v1519 = vmax.f32 %v1303, 0.0
        %v1520 = vmax.f32 %v1308, 0.0
        %v1521 = vmax.f32 %v1311, 0.0
        %v1522 = vmax.f32 %v1316, 0.0
        %v1523 = vmax.f32 %v1319, 0.0
        %v1524 = vmax.f32 %v1324, 0.0
        %v1525 = vmax.f32 %v1327, 0.0
        %v1526 = vmax.f32 %v1332, 0.0
        %v1527 = vmax.f32 %v1335, 0.0
        %v1528 = vmax.f32 %v1340, 0.0
        %v1529 = vmax.f32 %v1343, 0.0
        %v1530 = vmax.f32 %v1348, 0.0
        %v1531 = vmax.f32 %v1351, 0.0
        %v1532 = vmax.f32 %v1356, 0.0
        %v1533 = vmax.f32 %v1359, 0.0
        %v1534 = vmax.f32 %v1364, 0.0
        %v1535 = vmax.f32 %v1367, 0.0
        %v1536 = vmax.f32 %v1372, 0.0
        %v1537 = vmax.f32 %v1375, 0.0
        %v1538 = vmax.f32 %v1380, 0.0
        %v1539 = vmax.f32 %v1383, 0.0
        %v1540 = vmax.f32 %v1388, 0.0
        %v1541 = vmax.f32 %v1391, 0.0
        %v1542 = vmax.f32 %v1396, 0.0
        %v1543 = vmax.f32 %v1399, 0.0
        %v1544 = vmax.f32 %v1404, 0.0
        %v1545 = vmax.f32 %v1407, 0.0
        %v1546 = vmax.f32 %v1412, 0.0
        %v1547 = vmax.f32 %v1415, 0.0
        %v1548 = vmax.f32 %v1420, 0.0
        %v1549 = vmax.f32 %v1423, 0.0
        %v1550 = vmax.f32 %v1428, 0.0
        %v1551 = vmax.f32 %v1431, 0.0
        %v1552 = vmax.f32 %v1436, 0.0
        %v1553 = vmax.f32 %v1439, 0.0
        %v1554 = vmax.f32 %v1444, 0.0
        %v1555 = vmax.f32 %v1447, 0.0
        %v1556 = vmax.f32 %v1452, 0.0
        %v1557 = vmax.f32 %v1455, 0.0
        %v1558 = vmax.f32 %v1460, 0.0
        %v1559 = vmax.f32 %v1463, 0.0
        %v1560 = vmax.f32 %v1468, 0.0
        %v1561 = vmax.f32 %v1471, 0.0
        %v1562 = vmax.f32 %v1476, 0.0
        %v1563 = vmax.f32 %v1479, 0.0
        %v1564 = vmax.f32 %v1484, 0.0
        %v1565 = vmax.f32 %v1487, 0.0
        %v1566 = vmax.f32 %v1492, 0.0
        %v1567 = vmax.f32 %v1495, 0.0
        %v1568 = vmax.f32 %v1500, 0.0
        %v1569 = vmax.f32 %v1503, 0.0
        %v1570 = vmin.f32 %v1506, 6.0
        %v1571 = vmin.f32 %v1507, 6.0
        %v1572 = vmin.f32 %v1508, 6.0
        %v1573 = vmin.f32 %v1509, 6.0
        %v1574 = vmin.f32 %v1510, 6.0
        %v1575 = vmin.f32 %v1511, 6.0
        %v1576 = vmin.f32 %v1512, 6.0
        %v1577 = vmin.f32 %v1513, 6.0
        %v1578 = vmin.f32 %v1514, 6.0
        %v1579 = vmin.f32 %v1515, 6.0
        %v1580 = vmin.f32 %v1516, 6.0
        %v1581 = vmin.f32 %v1517, 6.0
        %v1582 = vmin.f32 %v1518, 6.0
        %v1583 = vmin.f32 %v1519, 6.0
        %v1584 = vmin.f32 %v1520, 6.0
        %v1585 = vmin.f32 %v1521, 6.0
        %v1586 = vmin.f32 %v1522, 6.0
        %v1587 = vmin.f32 %v1523, 6.0
        %v1588 = vmin.f32 %v1524, 6.0
        %v1589 = vmin.f32 %v1525, 6.0
        %v1590 = vmin.f32 %v1526, 6.0
        %v1591 = vmin.f32 %v1527, 6.0
        %v1592 = vmin.f32 %v1528, 6.0
        %v1593 = vmin.f32 %v1529, 6.0
        %v1594 = vmin.f32 %v1530, 6.0
        %v1595 = vmin.f32 %v1531, 6.0
        %v1596 = vmin.f32 %v1532, 6.0
        %v1597 = vmin.f32 %v1533, 6.0
        %v1598 = vmin.f32 %v1534, 6.0
        %v1599 = vmin.f32 %v1535, 6.0
        %v1600 = vmin.f32 %v1536, 6.0
        %v1601 = vmin.f32 %v1537, 6.0
        %v1602 = vmin.f32 %v1538, 6.0
        %v1603 = vmin.f32 %v1539, 6.0
        %v1604 = vmin.f32 %v1540, 6.0
        %v1605 = vmin.f32 %v1541, 6.0
        %v1606 = vmin.f32 %v1542, 6.0
        %v1607 = vmin.f32 %v1543, 6.0
        %v1608 = vmin.f32 %v1544, 6.0
        %v1609 = vmin.f32 %v1545, 6.0
        %v1610 = vmin.f32 %v1546, 6.0
        %v1611 = vmin.f32 %v1547, 6.0
        %v1612 = vmin.f32 %v1548, 6.0
        %v1613 = vmin.f32 %v1549, 6.0
        %v1614 = vmin.f32 %v1550, 6.0
        %v1615 = vmin.f32 %v1551, 6.0
        %v1616 = vmin.f32 %v1552, 6.0
        %v1617 = vmin.f32 %v1553, 6.0
        %v1618 = vmin.f32 %v1554, 6.0
        %v1619 = vmin.f32 %v1555, 6.0
        %v1620 = vmin.f32 %v1556, 6.0
        %v1621 = vmin.f32 %v1557, 6.0
        %v1622 = vmin.f32 %v1558, 6.0
        %v1623 = vmin.f32 %v1559, 6.0
        %v1624 = vmin.f32 %v1560, 6.0
        %v1625 = vmin.f32 %v1561, 6.0
        %v1626 = vmin.f32 %v1562, 6.0
        %v1627 = vmin.f32 %v1563, 6.0
        %v1628 = vmin.f32 %v1564, 6.0
        %v1629 = vmin.f32 %v1565, 6.0
        %v1630 = vmin.f32 %v1566, 6.0
        %v1631 = vmin.f32 %v1567, 6.0
        %v1632 = vmin.f32 %v1568, 6.0
        %v1633 = vmin.f32 %v1569, 6.0
        %v1634 = vpack.c.bf16 %v1571, %v1570
        %v1635 = vpack.c.bf16 %v1573, %v1572
        %v1636 = vpack.c.bf16 %v1575, %v1574
        %v1637 = vpack.c.bf16 %v1577, %v1576
        %v1638 = vpack.c.bf16 %v1579, %v1578
        %v1639 = vpack.c.bf16 %v1581, %v1580
        %v1640 = vpack.c.bf16 %v1583, %v1582
        %v1641 = vpack.c.bf16 %v1585, %v1584
        %v1642 = vpack.c.bf16 %v1587, %v1586
        %v1643 = vpack.c.bf16 %v1589, %v1588
        %v1644 = vpack.c.bf16 %v1591, %v1590
        %v1645 = vpack.c.bf16 %v1593, %v1592
        %v1646 = vpack.c.bf16 %v1595, %v1594
        %v1647 = vpack.c.bf16 %v1597, %v1596
        %v1648 = vpack.c.bf16 %v1599, %v1598
        %v1649 = vpack.c.bf16 %v1601, %v1600
        %v1650 = vpack.c.bf16 %v1603, %v1602
        %v1651 = vpack.c.bf16 %v1605, %v1604
        %v1652 = vpack.c.bf16 %v1607, %v1606
        %v1653 = vpack.c.bf16 %v1609, %v1608
        %v1654 = vpack.c.bf16 %v1611, %v1610
        %v1655 = vpack.c.bf16 %v1613, %v1612
        %v1656 = vpack.c.bf16 %v1615, %v1614
        %v1657 = vpack.c.bf16 %v1617, %v1616
        %v1658 = vpack.c.bf16 %v1619, %v1618
        %v1659 = vpack.c.bf16 %v1621, %v1620
        %v1660 = vpack.c.bf16 %v1623, %v1622
        %v1661 = vpack.c.bf16 %v1625, %v1624
        %v1662 = vpack.c.bf16 %v1627, %v1626
        %v1663 = vpack.c.bf16 %v1629, %v1628
        %v1664 = vpack.c.bf16 %v1631, %v1630
        %v1665 = vpack.c.bf16 %v1633, %v1632
        %v1698 = vunpack.c.l.b16 %v1634
        %v1699 = vunpack.c.h.b16 %v1634
        %v1700 = vunpack.c.l.b16 %v1635
        %v1701 = vunpack.c.h.b16 %v1635
        %v1702 = vunpack.c.l.b16 %v1636
        %v1703 = vunpack.c.h.b16 %v1636
        %v1704 = vunpack.c.l.b16 %v1637
        %v1705 = vunpack.c.h.b16 %v1637
        %v1706 = vunpack.c.l.b16 %v1638
        %v1707 = vunpack.c.h.b16 %v1638
        %v1708 = vunpack.c.l.b16 %v1639
        %v1709 = vunpack.c.h.b16 %v1639
        %v1710 = vunpack.c.l.b16 %v1640
        %v1711 = vunpack.c.h.b16 %v1640
        %v1712 = vunpack.c.l.b16 %v1641
        %v1713 = vunpack.c.h.b16 %v1641
        %v1714 = vunpack.c.l.b16 %v1642
        %v1715 = vunpack.c.h.b16 %v1642
        %v1716 = vunpack.c.l.b16 %v1643
        %v1717 = vunpack.c.h.b16 %v1643
        %v1718 = vunpack.c.l.b16 %v1644
        %v1719 = vunpack.c.h.b16 %v1644
        %v1720 = vunpack.c.l.b16 %v1645
        %v1721 = vunpack.c.h.b16 %v1645
        %v1722 = vunpack.c.l.b16 %v1646
        %v1723 = vunpack.c.h.b16 %v1646
        %v1724 = vunpack.c.l.b16 %v1647
        %v1725 = vunpack.c.h.b16 %v1647
        %v1726 = vunpack.c.l.b16 %v1648
        %v1727 = vunpack.c.h.b16 %v1648
        %v1728 = vunpack.c.l.b16 %v1649
        %v1729 = vunpack.c.h.b16 %v1649
        %v1730 = vunpack.c.l.b16 %v1650
        %v1731 = vunpack.c.h.b16 %v1650
        %v1732 = vunpack.c.l.b16 %v1651
        %v1733 = vunpack.c.h.b16 %v1651
        %v1734 = vunpack.c.l.b16 %v1652
        %v1735 = vunpack.c.h.b16 %v1652
        %v1736 = vunpack.c.l.b16 %v1653
        %v1737 = vunpack.c.h.b16 %v1653
        %v1738 = vunpack.c.l.b16 %v1654
        %v1739 = vunpack.c.h.b16 %v1654
        %v1740 = vunpack.c.l.b16 %v1655
        %v1741 = vunpack.c.h.b16 %v1655
        %v1742 = vunpack.c.l.b16 %v1656
        %v1743 = vunpack.c.h.b16 %v1656
        %v1744 = vunpack.c.l.b16 %v1657
        %v1745 = vunpack.c.h.b16 %v1657
        %v1746 = vunpack.c.l.b16 %v1658
        %v1747 = vunpack.c.h.b16 %v1658
        %v1748 = vunpack.c.l.b16 %v1659
        %v1749 = vunpack.c.h.b16 %v1659
        %v1750 = vunpack.c.l.b16 %v1660
        %v1751 = vunpack.c.h.b16 %v1660
        %v1752 = vunpack.c.l.b16 %v1661
        %v1753 = vunpack.c.h.b16 %v1661
        %v1754 = vunpack.c.l.b16 %v1662
        %v1755 = vunpack.c.h.b16 %v1662
        %v1756 = vunpack.c.l.b16 %v1663
        %v1757 = vunpack.c.h.b16 %v1663
        %v1758 = vunpack.c.l.b16 %v1664
        %v1759 = vunpack.c.h.b16 %v1664
        %v1760 = vunpack.c.l.b16 %v1665
        %v1761 = vunpack.c.h.b16 %v1665
        %v1762 = vpack.c.b16 %v1698, %v1698
        %v1763 = vpack.c.b16 %v1699, %v1699
        %v1764 = vpack.c.b16 %v1700, %v1700
        %v1765 = vpack.c.b16 %v1701, %v1701
        %v1766 = vpack.c.b16 %v1702, %v1702
        %v1767 = vpack.c.b16 %v1703, %v1703
        %v1768 = vpack.c.b16 %v1704, %v1704
        %v1769 = vpack.c.b16 %v1705, %v1705
        %v1770 = vpack.c.b16 %v1706, %v1706
        %v1771 = vpack.c.b16 %v1707, %v1707
        %v1772 = vpack.c.b16 %v1708, %v1708
        %v1773 = vpack.c.b16 %v1709, %v1709
        %v1774 = vpack.c.b16 %v1710, %v1710
        %v1775 = vpack.c.b16 %v1711, %v1711
        %v1776 = vpack.c.b16 %v1712, %v1712
        %v1777 = vpack.c.b16 %v1713, %v1713
        %v1778 = vpack.c.b16 %v1714, %v1714
        %v1779 = vpack.c.b16 %v1715, %v1715
        %v1780 = vpack.c.b16 %v1716, %v1716
        %v1781 = vpack.c.b16 %v1717, %v1717
        %v1782 = vpack.c.b16 %v1718, %v1718
        %v1783 = vpack.c.b16 %v1719, %v1719
        %v1784 = vpack.c.b16 %v1720, %v1720
        %v1785 = vpack.c.b16 %v1721, %v1721
        %v1786 = vpack.c.b16 %v1722, %v1722
        %v1787 = vpack.c.b16 %v1723, %v1723
        %v1788 = vpack.c.b16 %v1724, %v1724
        %v1789 = vpack.c.b16 %v1725, %v1725
        %v1790 = vpack.c.b16 %v1726, %v1726
        %v1791 = vpack.c.b16 %v1727, %v1727
        %v1792 = vpack.c.b16 %v1728, %v1728
        %v1793 = vpack.c.b16 %v1729, %v1729
        %v1794 = vpack.c.b16 %v1730, %v1730
        %v1795 = vpack.c.b16 %v1731, %v1731
        %v1796 = vpack.c.b16 %v1732, %v1732
        %v1797 = vpack.c.b16 %v1733, %v1733
        %v1798 = vpack.c.b16 %v1734, %v1734
        %v1799 = vpack.c.b16 %v1735, %v1735
        %v1800 = vpack.c.b16 %v1736, %v1736
        %v1801 = vpack.c.b16 %v1737, %v1737
        %v1802 = vpack.c.b16 %v1738, %v1738
        %v1803 = vpack.c.b16 %v1739, %v1739
        %v1804 = vpack.c.b16 %v1740, %v1740
        %v1805 = vpack.c.b16 %v1741, %v1741
        %v1806 = vpack.c.b16 %v1742, %v1742
        %v1807 = vpack.c.b16 %v1743, %v1743
        %v1808 = vpack.c.b16 %v1744, %v1744
        %v1809 = vpack.c.b16 %v1745, %v1745
        %v1810 = vpack.c.b16 %v1746, %v1746
        %v1811 = vpack.c.b16 %v1747, %v1747
        %v1812 = vpack.c.b16 %v1748, %v1748
        %v1813 = vpack.c.b16 %v1749, %v1749
        %v1814 = vpack.c.b16 %v1750, %v1750
        %v1815 = vpack.c.b16 %v1751, %v1751
        %v1816 = vpack.c.b16 %v1752, %v1752
        %v1817 = vpack.c.b16 %v1753, %v1753
        %v1818 = vpack.c.b16 %v1754, %v1754
        %v1819 = vpack.c.b16 %v1755, %v1755
        %v1820 = vpack.c.b16 %v1756, %v1756
        %v1821 = vpack.c.b16 %v1757, %v1757
        %v1822 = vpack.c.b16 %v1758, %v1758
        %v1823 = vpack.c.b16 %v1759, %v1759
        %v1824 = vpack.c.b16 %v1760, %v1760
        %v1825 = vpack.c.b16 %v1761, %v1761
        %1890 = vst [vmem:[%s299] sm:$0xf] %v1762
        %1891 = vst [vmem:[%s299 + $0x4] sm:$0xf] %v1763
        %1892 = vst [vmem:[%s299 + $0x8] sm:$0xf] %v1764
        %1893 = vst [vmem:[%s299 + $0xc] sm:$0xf] %v1765
        %1894 = vst [vmem:[%s299 + $0x10] sm:$0xf] %v1766
        %1895 = vst [vmem:[%s299 + $0x14] sm:$0xf] %v1767
        %1896 = vst [vmem:[%s299 + $0x18] sm:$0xf] %v1768
        %1897 = vst [vmem:[%s299 + $0x1c] sm:$0xf] %v1769
        %1898 = vst [vmem:[%s299 + $0x20] sm:$0xf] %v1770
        %1899 = vst [vmem:[%s299 + $0x24] sm:$0xf] %v1771
        %1900 = vst [vmem:[%s299 + $0x28] sm:$0xf] %v1772
        %1901 = vst [vmem:[%s299 + $0x2c] sm:$0xf] %v1773
        %1902 = vst [vmem:[%s299 + $0x30] sm:$0xf] %v1774
        %1903 = vst [vmem:[%s299 + $0x34] sm:$0xf] %v1775
        %1904 = vst [vmem:[%s299 + $0x38] sm:$0xf] %v1776
        %1905 = vst [vmem:[%s299 + $0x3c] sm:$0xf] %v1777
        %1906 = vst [vmem:[%s299 + $0x40] sm:$0xf] %v1778
        %1907 = vst [vmem:[%s299 + $0x44] sm:$0xf] %v1779
        %1908 = vst [vmem:[%s299 + $0x48] sm:$0xf] %v1780
        %1909 = vst [vmem:[%s299 + $0x4c] sm:$0xf] %v1781
        %1910 = vst [vmem:[%s299 + $0x50] sm:$0xf] %v1782
        %1911 = vst [vmem:[%s299 + $0x54] sm:$0xf] %v1783
        %1912 = vst [vmem:[%s299 + $0x58] sm:$0xf] %v1784
        %1913 = vst [vmem:[%s299 + $0x5c] sm:$0xf] %v1785
        %1914 = vst [vmem:[%s299 + $0x60] sm:$0xf] %v1786
        %1915 = vst [vmem:[%s299 + $0x64] sm:$0xf] %v1787
        %1916 = vst [vmem:[%s299 + $0x68] sm:$0xf] %v1788
        %1917 = vst [vmem:[%s299 + $0x6c] sm:$0xf] %v1789
        %1918 = vst [vmem:[%s299 + $0x70] sm:$0xf] %v1790
        %1919 = vst [vmem:[%s299 + $0x74] sm:$0xf] %v1791
        %1920 = vst [vmem:[%s299 + $0x78] sm:$0xf] %v1792
        %1921 = vst [vmem:[%s299 + $0x7c] sm:$0xf] %v1793
        %1922 = vst [vmem:[%s299 + $0x80] sm:$0xf] %v1794
        %1923 = vst [vmem:[%s299 + $0x84] sm:$0xf] %v1795
        %1924 = vst [vmem:[%s299 + $0x88] sm:$0xf] %v1796
        %1925 = vst [vmem:[%s299 + $0x8c] sm:$0xf] %v1797
        %1926 = vst [vmem:[%s299 + $0x90] sm:$0xf] %v1798
        %1927 = vst [vmem:[%s299 + $0x94] sm:$0xf] %v1799
        %1928 = vst [vmem:[%s299 + $0x98] sm:$0xf] %v1800
        %1929 = vst [vmem:[%s299 + $0x9c] sm:$0xf] %v1801
        %1930 = vst [vmem:[%s299 + $0xa0] sm:$0xf] %v1802
        %1931 = vst [vmem:[%s299 + $0xa4] sm:$0xf] %v1803
        %1932 = vst [vmem:[%s299 + $0xa8] sm:$0xf] %v1804
        %1933 = vst [vmem:[%s299 + $0xac] sm:$0xf] %v1805
        %1934 = vst [vmem:[%s299 + $0xb0] sm:$0xf] %v1806
        %1935 = vst [vmem:[%s299 + $0xb4] sm:$0xf] %v1807
        %1936 = vst [vmem:[%s299 + $0xb8] sm:$0xf] %v1808
        %1937 = vst [vmem:[%s299 + $0xbc] sm:$0xf] %v1809
        %1938 = vst [vmem:[%s299 + $0xc0] sm:$0xf] %v1810
        %1939 = vst [vmem:[%s299 + $0xc4] sm:$0xf] %v1811
        %1940 = vst [vmem:[%s299 + $0xc8] sm:$0xf] %v1812
        %1941 = vst [vmem:[%s299 + $0xcc] sm:$0xf] %v1813
        %1942 = vst [vmem:[%s299 + $0xd0] sm:$0xf] %v1814
        %1943 = vst [vmem:[%s299 + $0xd4] sm:$0xf] %v1815
        %1944 = vst [vmem:[%s299 + $0xd8] sm:$0xf] %v1816
        %1945 = vst [vmem:[%s299 + $0xdc] sm:$0xf] %v1817
        %1946 = vst [vmem:[%s299 + $0xe0] sm:$0xf] %v1818
        %1947 = vst [vmem:[%s299 + $0xe4] sm:$0xf] %v1819
        %1948 = vst [vmem:[%s299 + $0xe8] sm:$0xf] %v1820
        %1949 = vst [vmem:[%s299 + $0xec] sm:$0xf] %v1821
        %1950 = vst [vmem:[%s299 + $0xf0] sm:$0xf] %v1822
        %1951 = vst [vmem:[%s299 + $0xf4] sm:$0xf] %v1823
        %1952 = vst [vmem:[%s299 + $0xf8] sm:$0xf] %v1824
        %1953 = vst [vmem:[%s299 + $0xfc] sm:$0xf] %v1825
        %s1954 = sand.u32 %s109, 1
        %s1955 = scalar_lea.sflag [#allocation4], %s1954
        %s1956 = sand.u32 %s109, 1
        %s1957 = smul.addr %s1956, 256
        %s1958 = scalar_lea.vmem [#allocation3], %s1957
        // Predicated region
        $region74: #{tpu_custom_call.1} parent=68 // pred_check
          %p1959 = pneg %p119
        $region75: #{tpu_custom_call.1} parent=68 // pred_check_branch
          %1961 = sbr.rel (%p1959) target = $region77
        $region76: #{tpu_custom_call.1} parent=68 // pred_region
          %s1963 = ssub.s32 4096, 4096
          %1964 = vsyncadd %s1955, %s1963
          %s1965 = smul.addr %s21, 128
          %s1966 = sadd.s32 %s22, %s1965
          %s1967 = smul.addr %s1966, 64
          %s1968 = scalar_lea.hbm %s3, %s1967
          %s1969 = sshll.u32 %s1958, 4
          %s1970 = int_to_ptr.vmem [resolvable:$true] %s1969
          %1975 = dma.vmem_to_hbm [thread:$0]  %s1970, 4096, %s1968, %s1955, 64, 128, 4
        $region77: #{tpu_custom_call.1} parent=68 // pred_fallthru
          _
      $region69: #{tpu_custom_call.1} parent=5 // pred_fallthru
        _
      %p1976 = scmp.le.s32.totalorder 2, %s12
      // Predicated region
      $region78: #{tpu_custom_call.1} parent=5 // pred_check
        %p1977 = pneg %p1976
      $region79: #{tpu_custom_call.1} parent=5 // pred_check_branch
        %1979 = sbr.rel (%p1977) target = $region81
      $region80: #{tpu_custom_call.1} parent=5 // pred_region
        %s1980 = ssub.s32 %s12, 2
        // Predicated region
        $region82: #{tpu_custom_call.1} parent=80 // pred_check
          %p1981 = pneg %p125
        $region83: #{tpu_custom_call.1} parent=80 // pred_check_branch
          %1983 = sbr.rel (%p1981) target = $region85
        $region84: #{tpu_custom_call.1} parent=80 // pred_region
          %s1984 = sand.u32 %s110, 1
          %s1985 = scalar_lea.sflag [#allocation4], %s1984
          %s1986 = sand.u32 %s110, 1
          %s1987 = smul.addr %s1986, 256
          %s1988 = scalar_lea.vmem [#allocation3], %s1987
          %1989 = dma.done %s1985, 4096
        $region85: #{tpu_custom_call.1} parent=80 // pred_fallthru
          _
      $region81: #{tpu_custom_call.1} parent=5 // pred_fallthru
        _
    $region6: #{tpu_custom_call.1} parent=1 // loop_footer
      %s16 = sadd.s32 1, %s12
    $region7: #{tpu_custom_call.1} parent=1 // loop_footer_branch
      %11 = sbr.rel target = $region3
    $region8: #{tpu_custom_call.1} parent=1 // loop_exit
      _
    %1990 = vsyncpa [#allocation4], 1
    %s1991 = scalar_lea.sflag [#allocation4], 1
    %1992 = vsyncpa %s1991, 1

</llo_original>
